<compile_context>
chip_gen: v7x
topology: tpu7x:2x2x1
jax: 0.10.0
libtpu: 0.0.40
codegen_flags: <defaults>
</compile_context>

<pallas_src>
import functools

import numpy as np
import jax
import jax.numpy as jnp
from jax.experimental import pallas as pl
from jax.experimental.pallas import tpu as pltpu


# ----------------------------------------------------------------------------
# Kernel
# ----------------------------------------------------------------------------
def _kgather_kernel(r_idx_ref, *refs, tq, topk, p2, soft):
    # r_idx_ref: SMEM (n*p2*topk,) int32     (scalar prefetch, flat layout)
    # [w_ref]:   VMEM (tq, topk) f32         (only when soft)
    # k_ref:     VMEM (p2, w2, c)            (all windows of this batch element)
    # out_ref:   VMEM (tq, topk, w2, c)
    if soft:
        w_ref, k_ref, out_ref = refs
    else:
        k_ref, out_ref = refs
        w_ref = None

    b = pl.program_id(0)
    q0 = pl.program_id(1) * tq
    row0 = (b * p2 + q0) * topk                # scalar SMEM base offset

    for i in range(tq):                        # static unroll (tq*topk is capped)
        base = row0 + i * topk
        for t in range(topk):
            idx = r_idx_ref[base + t]          # scalar read from SMEM
            val = k_ref[idx]                   # (w2, c) dynamic leading-axis load
            if soft:
                w = w_ref[i, t].astype(jnp.float32)   # static-index scalar read
                val = (val.astype(jnp.float32) * w).astype(out_ref.dtype)
            else:
                val = val.astype(out_ref.dtype)
            out_ref[i, t] = val                # lane-dense (w2, c) store


# ----------------------------------------------------------------------------
# Wrapper
# ----------------------------------------------------------------------------
def _pick_tq(p2, topk, w2, c, itemsize, soft,
             max_unroll=64, max_block_bytes=4 << 20):
    # tq must divide p2 (grid coverage).  For 'soft', the (tq, topk) weight block
    # additionally needs tq == p2 or tq % 8 == 0 to satisfy the (8,128)/full-dim rule.
    if soft:
        cands = [t for t in range(1, p2 + 1)
                 if p2 % t == 0 and (t == p2 or t % 8 == 0)]
    else:
        cands = [t for t in range(1, p2 + 1) if p2 % t == 0]
    good = [t for t in cands
            if t * topk <= max_unroll
            and t * topk * w2 * c * itemsize <= max_block_bytes]
    return max(good) if good else min(cands)


def kgather_pallas(r_idx, r_weight, k, mul_weight="none"):
    assert mul_weight in ("none", "soft", "hard")
    if mul_weight == "hard":
        # TODO(synk): differentiable hard routing is NotImplemented in the original module too.
        raise NotImplementedError("differentiable hard routing TBA")
    n, p2, w2, c = k.shape
    topk = r_idx.shape[-1]
    assert r_idx.shape == (n, p2, topk), r_idx.shape
    assert r_weight.shape == (n, p2, topk), r_weight.shape
    soft = mul_weight == "soft"

    out_dtype = jnp.promote_types(k.dtype, r_weight.dtype) if soft else k.dtype
    idx_flat = r_idx.reshape(-1).astype(jnp.int32)    # 1-D SMEM: minimal padding
    tq = _pick_tq(p2, topk, w2, c, jnp.dtype(out_dtype).itemsize, soft)

    in_specs = []
    operands = []
    if soft:
        in_specs.append(pl.BlockSpec((None, tq, topk), lambda b, q, ridx: (b, q, 0)))
        operands.append(r_weight.astype(jnp.float32))
    # Whole k[b] resident in VMEM; block index only depends on b -> fetched once per b.
    in_specs.append(pl.BlockSpec((None, p2, w2, c), lambda b, q, ridx: (b, 0, 0, 0)))
    operands.append(k)

    kern = functools.partial(_kgather_kernel, tq=tq, topk=topk, p2=p2, soft=soft)
    out = pl.pallas_call(
        kern,
        out_shape=jax.ShapeDtypeStruct((n, p2, topk, w2, c), out_dtype),
        grid_spec=pltpu.PrefetchScalarGridSpec(
            num_scalar_prefetch=1,
            grid=(n, p2 // tq),
            in_specs=in_specs,
            out_specs=pl.BlockSpec((None, tq, topk, w2, c),
                                   lambda b, q, ridx: (b, q, 0, 0, 0)),
        ),
        compiler_params=pltpu.CompilerParams(
            dimension_semantics=("parallel", "parallel")),
    )(idx_flat, *operands)
    return out


# ----------------------------------------------------------------------------
# Pure-JAX reference (mirrors the torch.gather semantics exactly)
# ----------------------------------------------------------------------------
def kgather_ref(r_idx, r_weight, k, mul_weight="none"):
    def per_n(kn, idxn, wn):
        g = kn[idxn]                                   # (p2, topk, w2, c)
        if mul_weight == "soft":
            g = wn[:, :, None, None] * g               # natural dtype promotion
        return g

    return jax.vmap(per_n)(k, r_idx, r_weight)


# ----------------------------------------------------------------------------
# Self-test
# ----------------------------------------------------------------------------
if __name__ == "__main__":
    key = jax.random.PRNGKey(0)

    def run_case(case_key, n, p2, topk, w2, c, dtype, mode):
        k0, k1, k2 = jax.random.split(case_key, 3)
        kk = jax.random.normal(k0, (n, p2, w2, c), jnp.float32).astype(dtype)
        r_idx = jax.random.randint(k1, (n, p2, topk), 0, p2, jnp.int32)
        r_weight = jax.nn.softmax(
            jax.random.normal(k2, (n, p2, topk), jnp.float32), axis=-1)

        out = kgather_pallas(r_idx, r_weight, kk, mul_weight=mode)
        out = jax.block_until_ready(out)
        assert out.shape == (n, p2, topk, w2, c), out.shape

        ref = kgather_ref(r_idx, r_weight, kk, mul_weight=mode)
        np.testing.assert_allclose(
            np.asarray(out.astype(jnp.float32)),
            np.asarray(ref.astype(jnp.float32)),
            rtol=1e-6, atol=1e-6)

    keys = jax.random.split(key, 5)
    # main case: n = b*heads = 4, p2 = 16 regions, topk = 4, window w2 = 8, c_kq+c_v = 128
    run_case(keys[0], 4, 16, 4, 8, 128, jnp.float32, "none")
    # soft routing weights
    run_case(keys[1], 4, 16, 4, 8, 128, jnp.float32, "soft")
    # non-(8,128)-aligned window/channel sizes (blocks equal full dims)
    run_case(keys[2], 2, 16, 4, 4, 64, jnp.float32, "none")
    # bf16 storage at the HBM boundary
    run_case(keys[3], 4, 16, 4, 8, 128, jnp.bfloat16, "none")
    # larger p2 exercising a multi-step query-tile grid axis (soft path)
    run_case(keys[4], 2, 32, 4, 8, 128, jnp.float32, "soft")

    print("KERNEL_OK")
</pallas_src>

<mosaic_0001>
module attributes {stable_mosaic.version = 11 : i64} {
  func.func @_kgather_kernel(%arg0: i32, %arg1: i32, %arg2: memref<256xi32, #tpu.memory_space<smem>>, %arg3: memref<1x16x8x128xf32, #tpu.memory_space<vmem>>, %arg4: memref<1x16x4x8x128xf32, #tpu.memory_space<vmem>>) attributes {dimension_semantics = [#tpu.dimension_semantics<parallel>, #tpu.dimension_semantics<parallel>], iteration_bounds = array<i64: 4, 1>, scalar_prefetch = 1 : i64, scratch_operands = 0 : i64, tpu.core_type = #tpu.core_type<tc>, window_params = [{transform_indices = @transform_0, window_bounds = array<i64: 1, 16, 8, 128>}, {transform_indices = @transform_1, window_bounds = array<i64: 1, 16, 4, 8, 128>}]} {
    %c16_i32 = arith.constant 16 : i32
    %0 = arith.muli %arg1, %c16_i32 : i32
    %c16_i32_0 = arith.constant 16 : i32
    %1 = arith.muli %arg0, %c16_i32_0 : i32
    %2 = arith.addi %1, %0 : i32
    %c4_i32 = arith.constant 4 : i32
    %3 = arith.muli %2, %c4_i32 : i32
    %c0_i32 = arith.constant 0 : i32
    %4 = arith.addi %3, %c0_i32 : i32
    %c0_i32_1 = arith.constant 0 : i32
    %5 = arith.addi %4, %c0_i32_1 : i32
    %6 = arith.index_cast %5 : i32 to index
    %7 = memref.load %arg2[%6] : memref<256xi32, #tpu.memory_space<smem>>
    %c0 = arith.constant 0 : index
    %8 = arith.index_cast %7 : i32 to index
    %c0_2 = arith.constant 0 : index
    %c0_3 = arith.constant 0 : index
    %9 = vector.load %arg3[%c0, %8, %c0_2, %c0_3] : memref<1x16x8x128xf32, #tpu.memory_space<vmem>>, vector<1x1x8x128xf32>
    %10 = vector.shape_cast %9 : vector<1x1x8x128xf32> to vector<8x128xf32>
    %c0_4 = arith.constant 0 : index
    %c0_5 = arith.constant 0 : index
    %c0_6 = arith.constant 0 : index
    %c0_7 = arith.constant 0 : index
    %c0_8 = arith.constant 0 : index
    %11 = vector.load %arg4[%c0_4, %c0_5, %c0_6, %c0_7, %c0_8] : memref<1x16x4x8x128xf32, #tpu.memory_space<vmem>>, vector<1x1x1x8x128xf32>
    %12 = vector.shape_cast %11 : vector<1x1x1x8x128xf32> to vector<8x128xf32>
    %13 = vector.shape_cast %10 : vector<8x128xf32> to vector<1x1x1x8x128xf32>
    tpu.vector_store %arg4[%c0_4, %c0_5, %c0_6, %c0_7, %c0_8], %13 {strides = array<i32>} : memref<1x16x4x8x128xf32, #tpu.memory_space<vmem>>, vector<1x1x1x8x128xf32>,
    %c1_i32 = arith.constant 1 : i32
    %14 = arith.addi %4, %c1_i32 : i32
    %15 = arith.index_cast %14 : i32 to index
    %16 = memref.load %arg2[%15] : memref<256xi32, #tpu.memory_space<smem>>
    %c0_9 = arith.constant 0 : index
    %17 = arith.index_cast %16 : i32 to index
    %c0_10 = arith.constant 0 : index
    %c0_11 = arith.constant 0 : index
    %18 = vector.load %arg3[%c0_9, %17, %c0_10, %c0_11] : memref<1x16x8x128xf32, #tpu.memory_space<vmem>>, vector<1x1x8x128xf32>
    %19 = vector.shape_cast %18 : vector<1x1x8x128xf32> to vector<8x128xf32>
    %c0_12 = arith.constant 0 : index
    %c0_13 = arith.constant 0 : index
    %c1 = arith.constant 1 : index
    %c0_14 = arith.constant 0 : index
    %c0_15 = arith.constant 0 : index
    %20 = vector.load %arg4[%c0_12, %c0_13, %c1, %c0_14, %c0_15] : memref<1x16x4x8x128xf32, #tpu.memory_space<vmem>>, vector<1x1x1x8x128xf32>
    %21 = vector.shape_cast %20 : vector<1x1x1x8x128xf32> to vector<8x128xf32>
    %22 = vector.shape_cast %19 : vector<8x128xf32> to vector<1x1x1x8x128xf32>
    tpu.vector_store %arg4[%c0_12, %c0_13, %c1, %c0_14, %c0_15], %22 {strides = array<i32>} : memref<1x16x4x8x128xf32, #tpu.memory_space<vmem>>, vector<1x1x1x8x128xf32>,
    %c2_i32 = arith.constant 2 : i32
    %23 = arith.addi %4, %c2_i32 : i32
    %24 = arith.index_cast %23 : i32 to index
    %25 = memref.load %arg2[%24] : memref<256xi32, #tpu.memory_space<smem>>
    %c0_16 = arith.constant 0 : index
    %26 = arith.index_cast %25 : i32 to index
    %c0_17 = arith.constant 0 : index
    %c0_18 = arith.constant 0 : index
    %27 = vector.load %arg3[%c0_16, %26, %c0_17, %c0_18] : memref<1x16x8x128xf32, #tpu.memory_space<vmem>>, vector<1x1x8x128xf32>
    %28 = vector.shape_cast %27 : vector<1x1x8x128xf32> to vector<8x128xf32>
    %c0_19 = arith.constant 0 : index
    %c0_20 = arith.constant 0 : index
    %c2 = arith.constant 2 : index
    %c0_21 = arith.constant 0 : index
    %c0_22 = arith.constant 0 : index
    %29 = vector.load %arg4[%c0_19, %c0_20, %c2, %c0_21, %c0_22] : memref<1x16x4x8x128xf32, #tpu.memory_space<vmem>>, vector<1x1x1x8x128xf32>
    %30 = vector.shape_cast %29 : vector<1x1x1x8x128xf32> to vector<8x128xf32>
    %31 = vector.shape_cast %28 : vector<8x128xf32> to vector<1x1x1x8x128xf32>
    tpu.vector_store %arg4[%c0_19, %c0_20, %c2, %c0_21, %c0_22], %31 {strides = array<i32>} : memref<1x16x4x8x128xf32, #tpu.memory_space<vmem>>, vector<1x1x1x8x128xf32>,
    %c3_i32 = arith.constant 3 : i32
    %32 = arith.addi %4, %c3_i32 : i32
    %33 = arith.index_cast %32 : i32 to index
    %34 = memref.load %arg2[%33] : memref<256xi32, #tpu.memory_space<smem>>
    %c0_23 = arith.constant 0 : index
    %35 = arith.index_cast %34 : i32 to index
    %c0_24 = arith.constant 0 : index
    %c0_25 = arith.constant 0 : index
    %36 = vector.load %arg3[%c0_23, %35, %c0_24, %c0_25] : memref<1x16x8x128xf32, #tpu.memory_space<vmem>>, vector<1x1x8x128xf32>
    %37 = vector.shape_cast %36 : vector<1x1x8x128xf32> to vector<8x128xf32>
    %c0_26 = arith.constant 0 : index
    %c0_27 = arith.constant 0 : index
    %c3 = arith.constant 3 : index
    %c0_28 = arith.constant 0 : index
    %c0_29 = arith.constant 0 : index
    %38 = vector.load %arg4[%c0_26, %c0_27, %c3, %c0_28, %c0_29] : memref<1x16x4x8x128xf32, #tpu.memory_space<vmem>>, vector<1x1x1x8x128xf32>
    %39 = vector.shape_cast %38 : vector<1x1x1x8x128xf32> to vector<8x128xf32>
    %40 = vector.shape_cast %37 : vector<8x128xf32> to vector<1x1x1x8x128xf32>
    tpu.vector_store %arg4[%c0_26, %c0_27, %c3, %c0_28, %c0_29], %40 {strides = array<i32>} : memref<1x16x4x8x128xf32, #tpu.memory_space<vmem>>, vector<1x1x1x8x128xf32>,
    %c4_i32_30 = arith.constant 4 : i32
    %41 = arith.addi %3, %c4_i32_30 : i32
    %c0_i32_31 = arith.constant 0 : i32
    %42 = arith.addi %41, %c0_i32_31 : i32
    %43 = arith.index_cast %42 : i32 to index
    %44 = memref.load %arg2[%43] : memref<256xi32, #tpu.memory_space<smem>>
    %c0_32 = arith.constant 0 : index
    %45 = arith.index_cast %44 : i32 to index
    %c0_33 = arith.constant 0 : index
    %c0_34 = arith.constant 0 : index
    %46 = vector.load %arg3[%c0_32, %45, %c0_33, %c0_34] : memref<1x16x8x128xf32, #tpu.memory_space<vmem>>, vector<1x1x8x128xf32>
    %47 = vector.shape_cast %46 : vector<1x1x8x128xf32> to vector<8x128xf32>
    %c0_35 = arith.constant 0 : index
    %c1_36 = arith.constant 1 : index
    %c0_37 = arith.constant 0 : index
    %c0_38 = arith.constant 0 : index
    %c0_39 = arith.constant 0 : index
    %48 = vector.load %arg4[%c0_35, %c1_36, %c0_37, %c0_38, %c0_39] : memref<1x16x4x8x128xf32, #tpu.memory_space<vmem>>, vector<1x1x1x8x128xf32>
    %49 = vector.shape_cast %48 : vector<1x1x1x8x128xf32> to vector<8x128xf32>
    %50 = vector.shape_cast %47 : vector<8x128xf32> to vector<1x1x1x8x128xf32>
    tpu.vector_store %arg4[%c0_35, %c1_36, %c0_37, %c0_38, %c0_39], %50 {strides = array<i32>} : memref<1x16x4x8x128xf32, #tpu.memory_space<vmem>>, vector<1x1x1x8x128xf32>,
    %c1_i32_40 = arith.constant 1 : i32
    %51 = arith.addi %41, %c1_i32_40 : i32
    %52 = arith.index_cast %51 : i32 to index
    %53 = memref.load %arg2[%52] : memref<256xi32, #tpu.memory_space<smem>>
    %c0_41 = arith.constant 0 : index
    %54 = arith.index_cast %53 : i32 to index
    %c0_42 = arith.constant 0 : index
    %c0_43 = arith.constant 0 : index
    %55 = vector.load %arg3[%c0_41, %54, %c0_42, %c0_43] : memref<1x16x8x128xf32, #tpu.memory_space<vmem>>, vector<1x1x8x128xf32>
    %56 = vector.shape_cast %55 : vector<1x1x8x128xf32> to vector<8x128xf32>
    %c0_44 = arith.constant 0 : index
    %c1_45 = arith.constant 1 : index
    %c1_46 = arith.constant 1 : index
    %c0_47 = arith.constant 0 : index
    %c0_48 = arith.constant 0 : index
    %57 = vector.load %arg4[%c0_44, %c1_45, %c1_46, %c0_47, %c0_48] : memref<1x16x4x8x128xf32, #tpu.memory_space<vmem>>, vector<1x1x1x8x128xf32>
    %58 = vector.shape_cast %57 : vector<1x1x1x8x128xf32> to vector<8x128xf32>
    %59 = vector.shape_cast %56 : vector<8x128xf32> to vector<1x1x1x8x128xf32>
    tpu.vector_store %arg4[%c0_44, %c1_45, %c1_46, %c0_47, %c0_48], %59 {strides = array<i32>} : memref<1x16x4x8x128xf32, #tpu.memory_space<vmem>>, vector<1x1x1x8x128xf32>,
    %c2_i32_49 = arith.constant 2 : i32
    %60 = arith.addi %41, %c2_i32_49 : i32
    %61 = arith.index_cast %60 : i32 to index
    %62 = memref.load %arg2[%61] : memref<256xi32, #tpu.memory_space<smem>>
    %c0_50 = arith.constant 0 : index
    %63 = arith.index_cast %62 : i32 to index
    %c0_51 = arith.constant 0 : index
    %c0_52 = arith.constant 0 : index
    %64 = vector.load %arg3[%c0_50, %63, %c0_51, %c0_52] : memref<1x16x8x128xf32, #tpu.memory_space<vmem>>, vector<1x1x8x128xf32>
    %65 = vector.shape_cast %64 : vector<1x1x8x128xf32> to vector<8x128xf32>
    %c0_53 = arith.constant 0 : index
    %c1_54 = arith.constant 1 : index
    %c2_55 = arith.constant 2 : index
    %c0_56 = arith.constant 0 : index
    %c0_57 = arith.constant 0 : index
    %66 = vector.load %arg4[%c0_53, %c1_54, %c2_55, %c0_56, %c0_57] : memref<1x16x4x8x128xf32, #tpu.memory_space<vmem>>, vector<1x1x1x8x128xf32>
    %67 = vector.shape_cast %66 : vector<1x1x1x8x128xf32> to vector<8x128xf32>
    %68 = vector.shape_cast %65 : vector<8x128xf32> to vector<1x1x1x8x128xf32>
    tpu.vector_store %arg4[%c0_53, %c1_54, %c2_55, %c0_56, %c0_57], %68 {strides = array<i32>} : memref<1x16x4x8x128xf32, #tpu.memory_space<vmem>>, vector<1x1x1x8x128xf32>,
    %c3_i32_58 = arith.constant 3 : i32
    %69 = arith.addi %41, %c3_i32_58 : i32
    %70 = arith.index_cast %69 : i32 to index
    %71 = memref.load %arg2[%70] : memref<256xi32, #tpu.memory_space<smem>>
    %c0_59 = arith.constant 0 : index
    %72 = arith.index_cast %71 : i32 to index
    %c0_60 = arith.constant 0 : index
    %c0_61 = arith.constant 0 : index
    %73 = vector.load %arg3[%c0_59, %72, %c0_60, %c0_61] : memref<1x16x8x128xf32, #tpu.memory_space<vmem>>, vector<1x1x8x128xf32>
    %74 = vector.shape_cast %73 : vector<1x1x8x128xf32> to vector<8x128xf32>
    %c0_62 = arith.constant 0 : index
    %c1_63 = arith.constant 1 : index
    %c3_64 = arith.constant 3 : index
    %c0_65 = arith.constant 0 : index
    %c0_66 = arith.constant 0 : index
    %75 = vector.load %arg4[%c0_62, %c1_63, %c3_64, %c0_65, %c0_66] : memref<1x16x4x8x128xf32, #tpu.memory_space<vmem>>, vector<1x1x1x8x128xf32>
    %76 = vector.shape_cast %75 : vector<1x1x1x8x128xf32> to vector<8x128xf32>
    %77 = vector.shape_cast %74 : vector<8x128xf32> to vector<1x1x1x8x128xf32>
    tpu.vector_store %arg4[%c0_62, %c1_63, %c3_64, %c0_65, %c0_66], %77 {strides = array<i32>} : memref<1x16x4x8x128xf32, #tpu.memory_space<vmem>>, vector<1x1x1x8x128xf32>,
    %c8_i32 = arith.constant 8 : i32
    %78 = arith.addi %3, %c8_i32 : i32
    %c0_i32_67 = arith.constant 0 : i32
    %79 = arith.addi %78, %c0_i32_67 : i32
    %80 = arith.index_cast %79 : i32 to index
    %81 = memref.load %arg2[%80] : memref<256xi32, #tpu.memory_space<smem>>
    %c0_68 = arith.constant 0 : index
    %82 = arith.index_cast %81 : i32 to index
    %c0_69 = arith.constant 0 : index
    %c0_70 = arith.constant 0 : index
    %83 = vector.load %arg3[%c0_68, %82, %c0_69, %c0_70] : memref<1x16x8x128xf32, #tpu.memory_space<vmem>>, vector<1x1x8x128xf32>
    %84 = vector.shape_cast %83 : vector<1x1x8x128xf32> to vector<8x128xf32>
    %c0_71 = arith.constant 0 : index
    %c2_72 = arith.constant 2 : index
    %c0_73 = arith.constant 0 : index
    %c0_74 = arith.constant 0 : index
    %c0_75 = arith.constant 0 : index
    %85 = vector.load %arg4[%c0_71, %c2_72, %c0_73, %c0_74, %c0_75] : memref<1x16x4x8x128xf32, #tpu.memory_space<vmem>>, vector<1x1x1x8x128xf32>
    %86 = vector.shape_cast %85 : vector<1x1x1x8x128xf32> to vector<8x128xf32>
    %87 = vector.shape_cast %84 : vector<8x128xf32> to vector<1x1x1x8x128xf32>
    tpu.vector_store %arg4[%c0_71, %c2_72, %c0_73, %c0_74, %c0_75], %87 {strides = array<i32>} : memref<1x16x4x8x128xf32, #tpu.memory_space<vmem>>, vector<1x1x1x8x128xf32>,
    %c1_i32_76 = arith.constant 1 : i32
    %88 = arith.addi %78, %c1_i32_76 : i32
    %89 = arith.index_cast %88 : i32 to index
    %90 = memref.load %arg2[%89] : memref<256xi32, #tpu.memory_space<smem>>
    %c0_77 = arith.constant 0 : index
    %91 = arith.index_cast %90 : i32 to index
    %c0_78 = arith.constant 0 : index
    %c0_79 = arith.constant 0 : index
    %92 = vector.load %arg3[%c0_77, %91, %c0_78, %c0_79] : memref<1x16x8x128xf32, #tpu.memory_space<vmem>>, vector<1x1x8x128xf32>
    %93 = vector.shape_cast %92 : vector<1x1x8x128xf32> to vector<8x128xf32>
    %c0_80 = arith.constant 0 : index
    %c2_81 = arith.constant 2 : index
    %c1_82 = arith.constant 1 : index
    %c0_83 = arith.constant 0 : index
    %c0_84 = arith.constant 0 : index
    %94 = vector.load %arg4[%c0_80, %c2_81, %c1_82, %c0_83, %c0_84] : memref<1x16x4x8x128xf32, #tpu.memory_space<vmem>>, vector<1x1x1x8x128xf32>
    %95 = vector.shape_cast %94 : vector<1x1x1x8x128xf32> to vector<8x128xf32>
    %96 = vector.shape_cast %93 : vector<8x128xf32> to vector<1x1x1x8x128xf32>
    tpu.vector_store %arg4[%c0_80, %c2_81, %c1_82, %c0_83, %c0_84], %96 {strides = array<i32>} : memref<1x16x4x8x128xf32, #tpu.memory_space<vmem>>, vector<1x1x1x8x128xf32>,
    %c2_i32_85 = arith.constant 2 : i32
    %97 = arith.addi %78, %c2_i32_85 : i32
    %98 = arith.index_cast %97 : i32 to index
    %99 = memref.load %arg2[%98] : memref<256xi32, #tpu.memory_space<smem>>
    %c0_86 = arith.constant 0 : index
    %100 = arith.index_cast %99 : i32 to index
    %c0_87 = arith.constant 0 : index
    %c0_88 = arith.constant 0 : index
    %101 = vector.load %arg3[%c0_86, %100, %c0_87, %c0_88] : memref<1x16x8x128xf32, #tpu.memory_space<vmem>>, vector<1x1x8x128xf32>
    %102 = vector.shape_cast %101 : vector<1x1x8x128xf32> to vector<8x128xf32>
    %c0_89 = arith.constant 0 : index
    %c2_90 = arith.constant 2 : index
    %c2_91 = arith.constant 2 : index
    %c0_92 = arith.constant 0 : index
    %c0_93 = arith.constant 0 : index
    %103 = vector.load %arg4[%c0_89, %c2_90, %c2_91, %c0_92, %c0_93] : memref<1x16x4x8x128xf32, #tpu.memory_space<vmem>>, vector<1x1x1x8x128xf32>
    %104 = vector.shape_cast %103 : vector<1x1x1x8x128xf32> to vector<8x128xf32>
    %105 = vector.shape_cast %102 : vector<8x128xf32> to vector<1x1x1x8x128xf32>
    tpu.vector_store %arg4[%c0_89, %c2_90, %c2_91, %c0_92, %c0_93], %105 {strides = array<i32>} : memref<1x16x4x8x128xf32, #tpu.memory_space<vmem>>, vector<1x1x1x8x128xf32>,
    %c3_i32_94 = arith.constant 3 : i32
    %106 = arith.addi %78, %c3_i32_94 : i32
    %107 = arith.index_cast %106 : i32 to index
    %108 = memref.load %arg2[%107] : memref<256xi32, #tpu.memory_space<smem>>
    %c0_95 = arith.constant 0 : index
    %109 = arith.index_cast %108 : i32 to index
    %c0_96 = arith.constant 0 : index
    %c0_97 = arith.constant 0 : index
    %110 = vector.load %arg3[%c0_95, %109, %c0_96, %c0_97] : memref<1x16x8x128xf32, #tpu.memory_space<vmem>>, vector<1x1x8x128xf32>
    %111 = vector.shape_cast %110 : vector<1x1x8x128xf32> to vector<8x128xf32>
    %c0_98 = arith.constant 0 : index
    %c2_99 = arith.constant 2 : index
    %c3_100 = arith.constant 3 : index
    %c0_101 = arith.constant 0 : index
    %c0_102 = arith.constant 0 : index
    %112 = vector.load %arg4[%c0_98, %c2_99, %c3_100, %c0_101, %c0_102] : memref<1x16x4x8x128xf32, #tpu.memory_space<vmem>>, vector<1x1x1x8x128xf32>
    %113 = vector.shape_cast %112 : vector<1x1x1x8x128xf32> to vector<8x128xf32>
    %114 = vector.shape_cast %111 : vector<8x128xf32> to vector<1x1x1x8x128xf32>
    tpu.vector_store %arg4[%c0_98, %c2_99, %c3_100, %c0_101, %c0_102], %114 {strides = array<i32>} : memref<1x16x4x8x128xf32, #tpu.memory_space<vmem>>, vector<1x1x1x8x128xf32>,
    %c12_i32 = arith.constant 12 : i32
    %115 = arith.addi %3, %c12_i32 : i32
    %c0_i32_103 = arith.constant 0 : i32
    %116 = arith.addi %115, %c0_i32_103 : i32
    %117 = arith.index_cast %116 : i32 to index
    %118 = memref.load %arg2[%117] : memref<256xi32, #tpu.memory_space<smem>>
    %c0_104 = arith.constant 0 : index
    %119 = arith.index_cast %118 : i32 to index
    %c0_105 = arith.constant 0 : index
    %c0_106 = arith.constant 0 : index
    %120 = vector.load %arg3[%c0_104, %119, %c0_105, %c0_106] : memref<1x16x8x128xf32, #tpu.memory_space<vmem>>, vector<1x1x8x128xf32>
    %121 = vector.shape_cast %120 : vector<1x1x8x128xf32> to vector<8x128xf32>
    %c0_107 = arith.constant 0 : index
    %c3_108 = arith.constant 3 : index
    %c0_109 = arith.constant 0 : index
    %c0_110 = arith.constant 0 : index
    %c0_111 = arith.constant 0 : index
    %122 = vector.load %arg4[%c0_107, %c3_108, %c0_109, %c0_110, %c0_111] : memref<1x16x4x8x128xf32, #tpu.memory_space<vmem>>, vector<1x1x1x8x128xf32>
    %123 = vector.shape_cast %122 : vector<1x1x1x8x128xf32> to vector<8x128xf32>
    %124 = vector.shape_cast %121 : vector<8x128xf32> to vector<1x1x1x8x128xf32>
    tpu.vector_store %arg4[%c0_107, %c3_108, %c0_109, %c0_110, %c0_111], %124 {strides = array<i32>} : memref<1x16x4x8x128xf32, #tpu.memory_space<vmem>>, vector<1x1x1x8x128xf32>,
    %c1_i32_112 = arith.constant 1 : i32
    %125 = arith.addi %115, %c1_i32_112 : i32
    %126 = arith.index_cast %125 : i32 to index
    %127 = memref.load %arg2[%126] : memref<256xi32, #tpu.memory_space<smem>>
    %c0_113 = arith.constant 0 : index
    %128 = arith.index_cast %127 : i32 to index
    %c0_114 = arith.constant 0 : index
    %c0_115 = arith.constant 0 : index
    %129 = vector.load %arg3[%c0_113, %128, %c0_114, %c0_115] : memref<1x16x8x128xf32, #tpu.memory_space<vmem>>, vector<1x1x8x128xf32>
    %130 = vector.shape_cast %129 : vector<1x1x8x128xf32> to vector<8x128xf32>
    %c0_116 = arith.constant 0 : index
    %c3_117 = arith.constant 3 : index
    %c1_118 = arith.constant 1 : index
    %c0_119 = arith.constant 0 : index
    %c0_120 = arith.constant 0 : index
    %131 = vector.load %arg4[%c0_116, %c3_117, %c1_118, %c0_119, %c0_120] : memref<1x16x4x8x128xf32, #tpu.memory_space<vmem>>, vector<1x1x1x8x128xf32>
    %132 = vector.shape_cast %131 : vector<1x1x1x8x128xf32> to vector<8x128xf32>
    %133 = vector.shape_cast %130 : vector<8x128xf32> to vector<1x1x1x8x128xf32>
    tpu.vector_store %arg4[%c0_116, %c3_117, %c1_118, %c0_119, %c0_120], %133 {strides = array<i32>} : memref<1x16x4x8x128xf32, #tpu.memory_space<vmem>>, vector<1x1x1x8x128xf32>,
    %c2_i32_121 = arith.constant 2 : i32
    %134 = arith.addi %115, %c2_i32_121 : i32
    %135 = arith.index_cast %134 : i32 to index
    %136 = memref.load %arg2[%135] : memref<256xi32, #tpu.memory_space<smem>>
    %c0_122 = arith.constant 0 : index
    %137 = arith.index_cast %136 : i32 to index
    %c0_123 = arith.constant 0 : index
    %c0_124 = arith.constant 0 : index
    %138 = vector.load %arg3[%c0_122, %137, %c0_123, %c0_124] : memref<1x16x8x128xf32, #tpu.memory_space<vmem>>, vector<1x1x8x128xf32>
    %139 = vector.shape_cast %138 : vector<1x1x8x128xf32> to vector<8x128xf32>
    %c0_125 = arith.constant 0 : index
    %c3_126 = arith.constant 3 : index
    %c2_127 = arith.constant 2 : index
    %c0_128 = arith.constant 0 : index
    %c0_129 = arith.constant 0 : index
    %140 = vector.load %arg4[%c0_125, %c3_126, %c2_127, %c0_128, %c0_129] : memref<1x16x4x8x128xf32, #tpu.memory_space<vmem>>, vector<1x1x1x8x128xf32>
    %141 = vector.shape_cast %140 : vector<1x1x1x8x128xf32> to vector<8x128xf32>
    %142 = vector.shape_cast %139 : vector<8x128xf32> to vector<1x1x1x8x128xf32>
    tpu.vector_store %arg4[%c0_125, %c3_126, %c2_127, %c0_128, %c0_129], %142 {strides = array<i32>} : memref<1x16x4x8x128xf32, #tpu.memory_space<vmem>>, vector<1x1x1x8x128xf32>,
    %c3_i32_130 = arith.constant 3 : i32
    %143 = arith.addi %115, %c3_i32_130 : i32
    %144 = arith.index_cast %143 : i32 to index
    %145 = memref.load %arg2[%144] : memref<256xi32, #tpu.memory_space<smem>>
    %c0_131 = arith.constant 0 : index
    %146 = arith.index_cast %145 : i32 to index
    %c0_132 = arith.constant 0 : index
    %c0_133 = arith.constant 0 : index
    %147 = vector.load %arg3[%c0_131, %146, %c0_132, %c0_133] : memref<1x16x8x128xf32, #tpu.memory_space<vmem>>, vector<1x1x8x128xf32>
    %148 = vector.shape_cast %147 : vector<1x1x8x128xf32> to vector<8x128xf32>
    %c0_134 = arith.constant 0 : index
    %c3_135 = arith.constant 3 : index
    %c3_136 = arith.constant 3 : index
    %c0_137 = arith.constant 0 : index
    %c0_138 = arith.constant 0 : index
    %149 = vector.load %arg4[%c0_134, %c3_135, %c3_136, %c0_137, %c0_138] : memref<1x16x4x8x128xf32, #tpu.memory_space<vmem>>, vector<1x1x1x8x128xf32>
    %150 = vector.shape_cast %149 : vector<1x1x1x8x128xf32> to vector<8x128xf32>
    %151 = vector.shape_cast %148 : vector<8x128xf32> to vector<1x1x1x8x128xf32>
    tpu.vector_store %arg4[%c0_134, %c3_135, %c3_136, %c0_137, %c0_138], %151 {strides = array<i32>} : memref<1x16x4x8x128xf32, #tpu.memory_space<vmem>>, vector<1x1x1x8x128xf32>,
    %c16_i32_139 = arith.constant 16 : i32
    %152 = arith.addi %3, %c16_i32_139 : i32
    %c0_i32_140 = arith.constant 0 : i32
    %153 = arith.addi %152, %c0_i32_140 : i32
    %154 = arith.index_cast %153 : i32 to index
    %155 = memref.load %arg2[%154] : memref<256xi32, #tpu.memory_space<smem>>
    %c0_141 = arith.constant 0 : index
    %156 = arith.index_cast %155 : i32 to index
    %c0_142 = arith.constant 0 : index
    %c0_143 = arith.constant 0 : index
    %157 = vector.load %arg3[%c0_141, %156, %c0_142, %c0_143] : memref<1x16x8x128xf32, #tpu.memory_space<vmem>>, vector<1x1x8x128xf32>
    %158 = vector.shape_cast %157 : vector<1x1x8x128xf32> to vector<8x128xf32>
    %c0_144 = arith.constant 0 : index
    %c4 = arith.constant 4 : index
    %c0_145 = arith.constant 0 : index
    %c0_146 = arith.constant 0 : index
    %c0_147 = arith.constant 0 : index
    %159 = vector.load %arg4[%c0_144, %c4, %c0_145, %c0_146, %c0_147] : memref<1x16x4x8x128xf32, #tpu.memory_space<vmem>>, vector<1x1x1x8x128xf32>
    %160 = vector.shape_cast %159 : vector<1x1x1x8x128xf32> to vector<8x128xf32>
    %161 = vector.shape_cast %158 : vector<8x128xf32> to vector<1x1x1x8x128xf32>
    tpu.vector_store %arg4[%c0_144, %c4, %c0_145, %c0_146, %c0_147], %161 {strides = array<i32>} : memref<1x16x4x8x128xf32, #tpu.memory_space<vmem>>, vector<1x1x1x8x128xf32>,
    %c1_i32_148 = arith.constant 1 : i32
    %162 = arith.addi %152, %c1_i32_148 : i32
    %163 = arith.index_cast %162 : i32 to index
    %164 = memref.load %arg2[%163] : memref<256xi32, #tpu.memory_space<smem>>
    %c0_149 = arith.constant 0 : index
    %165 = arith.index_cast %164 : i32 to index
    %c0_150 = arith.constant 0 : index
    %c0_151 = arith.constant 0 : index
    %166 = vector.load %arg3[%c0_149, %165, %c0_150, %c0_151] : memref<1x16x8x128xf32, #tpu.memory_space<vmem>>, vector<1x1x8x128xf32>
    %167 = vector.shape_cast %166 : vector<1x1x8x128xf32> to vector<8x128xf32>
    %c0_152 = arith.constant 0 : index
    %c4_153 = arith.constant 4 : index
    %c1_154 = arith.constant 1 : index
    %c0_155 = arith.constant 0 : index
    %c0_156 = arith.constant 0 : index
    %168 = vector.load %arg4[%c0_152, %c4_153, %c1_154, %c0_155, %c0_156] : memref<1x16x4x8x128xf32, #tpu.memory_space<vmem>>, vector<1x1x1x8x128xf32>
    %169 = vector.shape_cast %168 : vector<1x1x1x8x128xf32> to vector<8x128xf32>
    %170 = vector.shape_cast %167 : vector<8x128xf32> to vector<1x1x1x8x128xf32>
    tpu.vector_store %arg4[%c0_152, %c4_153, %c1_154, %c0_155, %c0_156], %170 {strides = array<i32>} : memref<1x16x4x8x128xf32, #tpu.memory_space<vmem>>, vector<1x1x1x8x128xf32>,
    %c2_i32_157 = arith.constant 2 : i32
    %171 = arith.addi %152, %c2_i32_157 : i32
    %172 = arith.index_cast %171 : i32 to index
    %173 = memref.load %arg2[%172] : memref<256xi32, #tpu.memory_space<smem>>
    %c0_158 = arith.constant 0 : index
    %174 = arith.index_cast %173 : i32 to index
    %c0_159 = arith.constant 0 : index
    %c0_160 = arith.constant 0 : index
    %175 = vector.load %arg3[%c0_158, %174, %c0_159, %c0_160] : memref<1x16x8x128xf32, #tpu.memory_space<vmem>>, vector<1x1x8x128xf32>
    %176 = vector.shape_cast %175 : vector<1x1x8x128xf32> to vector<8x128xf32>
    %c0_161 = arith.constant 0 : index
    %c4_162 = arith.constant 4 : index
    %c2_163 = arith.constant 2 : index
    %c0_164 = arith.constant 0 : index
    %c0_165 = arith.constant 0 : index
    %177 = vector.load %arg4[%c0_161, %c4_162, %c2_163, %c0_164, %c0_165] : memref<1x16x4x8x128xf32, #tpu.memory_space<vmem>>, vector<1x1x1x8x128xf32>
    %178 = vector.shape_cast %177 : vector<1x1x1x8x128xf32> to vector<8x128xf32>
    %179 = vector.shape_cast %176 : vector<8x128xf32> to vector<1x1x1x8x128xf32>
    tpu.vector_store %arg4[%c0_161, %c4_162, %c2_163, %c0_164, %c0_165], %179 {strides = array<i32>} : memref<1x16x4x8x128xf32, #tpu.memory_space<vmem>>, vector<1x1x1x8x128xf32>,
    %c3_i32_166 = arith.constant 3 : i32
    %180 = arith.addi %152, %c3_i32_166 : i32
    %181 = arith.index_cast %180 : i32 to index
    %182 = memref.load %arg2[%181] : memref<256xi32, #tpu.memory_space<smem>>
    %c0_167 = arith.constant 0 : index
    %183 = arith.index_cast %182 : i32 to index
    %c0_168 = arith.constant 0 : index
    %c0_169 = arith.constant 0 : index
    %184 = vector.load %arg3[%c0_167, %183, %c0_168, %c0_169] : memref<1x16x8x128xf32, #tpu.memory_space<vmem>>, vector<1x1x8x128xf32>
    %185 = vector.shape_cast %184 : vector<1x1x8x128xf32> to vector<8x128xf32>
    %c0_170 = arith.constant 0 : index
    %c4_171 = arith.constant 4 : index
    %c3_172 = arith.constant 3 : index
    %c0_173 = arith.constant 0 : index
    %c0_174 = arith.constant 0 : index
    %186 = vector.load %arg4[%c0_170, %c4_171, %c3_172, %c0_173, %c0_174] : memref<1x16x4x8x128xf32, #tpu.memory_space<vmem>>, vector<1x1x1x8x128xf32>
    %187 = vector.shape_cast %186 : vector<1x1x1x8x128xf32> to vector<8x128xf32>
    %188 = vector.shape_cast %185 : vector<8x128xf32> to vector<1x1x1x8x128xf32>
    tpu.vector_store %arg4[%c0_170, %c4_171, %c3_172, %c0_173, %c0_174], %188 {strides = array<i32>} : memref<1x16x4x8x128xf32, #tpu.memory_space<vmem>>, vector<1x1x1x8x128xf32>,
    %c20_i32 = arith.constant 20 : i32
    %189 = arith.addi %3, %c20_i32 : i32
    %c0_i32_175 = arith.constant 0 : i32
    %190 = arith.addi %189, %c0_i32_175 : i32
    %191 = arith.index_cast %190 : i32 to index
    %192 = memref.load %arg2[%191] : memref<256xi32, #tpu.memory_space<smem>>
    %c0_176 = arith.constant 0 : index
    %193 = arith.index_cast %192 : i32 to index
    %c0_177 = arith.constant 0 : index
    %c0_178 = arith.constant 0 : index
    %194 = vector.load %arg3[%c0_176, %193, %c0_177, %c0_178] : memref<1x16x8x128xf32, #tpu.memory_space<vmem>>, vector<1x1x8x128xf32>
    %195 = vector.shape_cast %194 : vector<1x1x8x128xf32> to vector<8x128xf32>
    %c0_179 = arith.constant 0 : index
    %c5 = arith.constant 5 : index
    %c0_180 = arith.constant 0 : index
    %c0_181 = arith.constant 0 : index
    %c0_182 = arith.constant 0 : index
    %196 = vector.load %arg4[%c0_179, %c5, %c0_180, %c0_181, %c0_182] : memref<1x16x4x8x128xf32, #tpu.memory_space<vmem>>, vector<1x1x1x8x128xf32>
    %197 = vector.shape_cast %196 : vector<1x1x1x8x128xf32> to vector<8x128xf32>
    %198 = vector.shape_cast %195 : vector<8x128xf32> to vector<1x1x1x8x128xf32>
    tpu.vector_store %arg4[%c0_179, %c5, %c0_180, %c0_181, %c0_182], %198 {strides = array<i32>} : memref<1x16x4x8x128xf32, #tpu.memory_space<vmem>>, vector<1x1x1x8x128xf32>,
    %c1_i32_183 = arith.constant 1 : i32
    %199 = arith.addi %189, %c1_i32_183 : i32
    %200 = arith.index_cast %199 : i32 to index
    %201 = memref.load %arg2[%200] : memref<256xi32, #tpu.memory_space<smem>>
    %c0_184 = arith.constant 0 : index
    %202 = arith.index_cast %201 : i32 to index
    %c0_185 = arith.constant 0 : index
    %c0_186 = arith.constant 0 : index
    %203 = vector.load %arg3[%c0_184, %202, %c0_185, %c0_186] : memref<1x16x8x128xf32, #tpu.memory_space<vmem>>, vector<1x1x8x128xf32>
    %204 = vector.shape_cast %203 : vector<1x1x8x128xf32> to vector<8x128xf32>
    %c0_187 = arith.constant 0 : index
    %c5_188 = arith.constant 5 : index
    %c1_189 = arith.constant 1 : index
    %c0_190 = arith.constant 0 : index
    %c0_191 = arith.constant 0 : index
    %205 = vector.load %arg4[%c0_187, %c5_188, %c1_189, %c0_190, %c0_191] : memref<1x16x4x8x128xf32, #tpu.memory_space<vmem>>, vector<1x1x1x8x128xf32>
    %206 = vector.shape_cast %205 : vector<1x1x1x8x128xf32> to vector<8x128xf32>
    %207 = vector.shape_cast %204 : vector<8x128xf32> to vector<1x1x1x8x128xf32>
    tpu.vector_store %arg4[%c0_187, %c5_188, %c1_189, %c0_190, %c0_191], %207 {strides = array<i32>} : memref<1x16x4x8x128xf32, #tpu.memory_space<vmem>>, vector<1x1x1x8x128xf32>,
    %c2_i32_192 = arith.constant 2 : i32
    %208 = arith.addi %189, %c2_i32_192 : i32
    %209 = arith.index_cast %208 : i32 to index
    %210 = memref.load %arg2[%209] : memref<256xi32, #tpu.memory_space<smem>>
    %c0_193 = arith.constant 0 : index
    %211 = arith.index_cast %210 : i32 to index
    %c0_194 = arith.constant 0 : index
    %c0_195 = arith.constant 0 : index
    %212 = vector.load %arg3[%c0_193, %211, %c0_194, %c0_195] : memref<1x16x8x128xf32, #tpu.memory_space<vmem>>, vector<1x1x8x128xf32>
    %213 = vector.shape_cast %212 : vector<1x1x8x128xf32> to vector<8x128xf32>
    %c0_196 = arith.constant 0 : index
    %c5_197 = arith.constant 5 : index
    %c2_198 = arith.constant 2 : index
    %c0_199 = arith.constant 0 : index
    %c0_200 = arith.constant 0 : index
    %214 = vector.load %arg4[%c0_196, %c5_197, %c2_198, %c0_199, %c0_200] : memref<1x16x4x8x128xf32, #tpu.memory_space<vmem>>, vector<1x1x1x8x128xf32>
    %215 = vector.shape_cast %214 : vector<1x1x1x8x128xf32> to vector<8x128xf32>
    %216 = vector.shape_cast %213 : vector<8x128xf32> to vector<1x1x1x8x128xf32>
    tpu.vector_store %arg4[%c0_196, %c5_197, %c2_198, %c0_199, %c0_200], %216 {strides = array<i32>} : memref<1x16x4x8x128xf32, #tpu.memory_space<vmem>>, vector<1x1x1x8x128xf32>,
    %c3_i32_201 = arith.constant 3 : i32
    %217 = arith.addi %189, %c3_i32_201 : i32
    %218 = arith.index_cast %217 : i32 to index
    %219 = memref.load %arg2[%218] : memref<256xi32, #tpu.memory_space<smem>>
    %c0_202 = arith.constant 0 : index
    %220 = arith.index_cast %219 : i32 to index
    %c0_203 = arith.constant 0 : index
    %c0_204 = arith.constant 0 : index
    %221 = vector.load %arg3[%c0_202, %220, %c0_203, %c0_204] : memref<1x16x8x128xf32, #tpu.memory_space<vmem>>, vector<1x1x8x128xf32>
    %222 = vector.shape_cast %221 : vector<1x1x8x128xf32> to vector<8x128xf32>
    %c0_205 = arith.constant 0 : index
    %c5_206 = arith.constant 5 : index
    %c3_207 = arith.constant 3 : index
    %c0_208 = arith.constant 0 : index
    %c0_209 = arith.constant 0 : index
    %223 = vector.load %arg4[%c0_205, %c5_206, %c3_207, %c0_208, %c0_209] : memref<1x16x4x8x128xf32, #tpu.memory_space<vmem>>, vector<1x1x1x8x128xf32>
    %224 = vector.shape_cast %223 : vector<1x1x1x8x128xf32> to vector<8x128xf32>
    %225 = vector.shape_cast %222 : vector<8x128xf32> to vector<1x1x1x8x128xf32>
    tpu.vector_store %arg4[%c0_205, %c5_206, %c3_207, %c0_208, %c0_209], %225 {strides = array<i32>} : memref<1x16x4x8x128xf32, #tpu.memory_space<vmem>>, vector<1x1x1x8x128xf32>,
    %c24_i32 = arith.constant 24 : i32
    %226 = arith.addi %3, %c24_i32 : i32
    %c0_i32_210 = arith.constant 0 : i32
    %227 = arith.addi %226, %c0_i32_210 : i32
    %228 = arith.index_cast %227 : i32 to index
    %229 = memref.load %arg2[%228] : memref<256xi32, #tpu.memory_space<smem>>
    %c0_211 = arith.constant 0 : index
    %230 = arith.index_cast %229 : i32 to index
    %c0_212 = arith.constant 0 : index
    %c0_213 = arith.constant 0 : index
    %231 = vector.load %arg3[%c0_211, %230, %c0_212, %c0_213] : memref<1x16x8x128xf32, #tpu.memory_space<vmem>>, vector<1x1x8x128xf32>
    %232 = vector.shape_cast %231 : vector<1x1x8x128xf32> to vector<8x128xf32>
    %c0_214 = arith.constant 0 : index
    %c6 = arith.constant 6 : index
    %c0_215 = arith.constant 0 : index
    %c0_216 = arith.constant 0 : index
    %c0_217 = arith.constant 0 : index
    %233 = vector.load %arg4[%c0_214, %c6, %c0_215, %c0_216, %c0_217] : memref<1x16x4x8x128xf32, #tpu.memory_space<vmem>>, vector<1x1x1x8x128xf32>
    %234 = vector.shape_cast %233 : vector<1x1x1x8x128xf32> to vector<8x128xf32>
    %235 = vector.shape_cast %232 : vector<8x128xf32> to vector<1x1x1x8x128xf32>
    tpu.vector_store %arg4[%c0_214, %c6, %c0_215, %c0_216, %c0_217], %235 {strides = array<i32>} : memref<1x16x4x8x128xf32, #tpu.memory_space<vmem>>, vector<1x1x1x8x128xf32>,
    %c1_i32_218 = arith.constant 1 : i32
    %236 = arith.addi %226, %c1_i32_218 : i32
    %237 = arith.index_cast %236 : i32 to index
    %238 = memref.load %arg2[%237] : memref<256xi32, #tpu.memory_space<smem>>
    %c0_219 = arith.constant 0 : index
    %239 = arith.index_cast %238 : i32 to index
    %c0_220 = arith.constant 0 : index
    %c0_221 = arith.constant 0 : index
    %240 = vector.load %arg3[%c0_219, %239, %c0_220, %c0_221] : memref<1x16x8x128xf32, #tpu.memory_space<vmem>>, vector<1x1x8x128xf32>
    %241 = vector.shape_cast %240 : vector<1x1x8x128xf32> to vector<8x128xf32>
    %c0_222 = arith.constant 0 : index
    %c6_223 = arith.constant 6 : index
    %c1_224 = arith.constant 1 : index
    %c0_225 = arith.constant 0 : index
    %c0_226 = arith.constant 0 : index
    %242 = vector.load %arg4[%c0_222, %c6_223, %c1_224, %c0_225, %c0_226] : memref<1x16x4x8x128xf32, #tpu.memory_space<vmem>>, vector<1x1x1x8x128xf32>
    %243 = vector.shape_cast %242 : vector<1x1x1x8x128xf32> to vector<8x128xf32>
    %244 = vector.shape_cast %241 : vector<8x128xf32> to vector<1x1x1x8x128xf32>
    tpu.vector_store %arg4[%c0_222, %c6_223, %c1_224, %c0_225, %c0_226], %244 {strides = array<i32>} : memref<1x16x4x8x128xf32, #tpu.memory_space<vmem>>, vector<1x1x1x8x128xf32>,
    %c2_i32_227 = arith.constant 2 : i32
    %245 = arith.addi %226, %c2_i32_227 : i32
    %246 = arith.index_cast %245 : i32 to index
    %247 = memref.load %arg2[%246] : memref<256xi32, #tpu.memory_space<smem>>
    %c0_228 = arith.constant 0 : index
    %248 = arith.index_cast %247 : i32 to index
    %c0_229 = arith.constant 0 : index
    %c0_230 = arith.constant 0 : index
    %249 = vector.load %arg3[%c0_228, %248, %c0_229, %c0_230] : memref<1x16x8x128xf32, #tpu.memory_space<vmem>>, vector<1x1x8x128xf32>
    %250 = vector.shape_cast %249 : vector<1x1x8x128xf32> to vector<8x128xf32>
    %c0_231 = arith.constant 0 : index
    %c6_232 = arith.constant 6 : index
    %c2_233 = arith.constant 2 : index
    %c0_234 = arith.constant 0 : index
    %c0_235 = arith.constant 0 : index
    %251 = vector.load %arg4[%c0_231, %c6_232, %c2_233, %c0_234, %c0_235] : memref<1x16x4x8x128xf32, #tpu.memory_space<vmem>>, vector<1x1x1x8x128xf32>
    %252 = vector.shape_cast %251 : vector<1x1x1x8x128xf32> to vector<8x128xf32>
    %253 = vector.shape_cast %250 : vector<8x128xf32> to vector<1x1x1x8x128xf32>
    tpu.vector_store %arg4[%c0_231, %c6_232, %c2_233, %c0_234, %c0_235], %253 {strides = array<i32>} : memref<1x16x4x8x128xf32, #tpu.memory_space<vmem>>, vector<1x1x1x8x128xf32>,
    %c3_i32_236 = arith.constant 3 : i32
    %254 = arith.addi %226, %c3_i32_236 : i32
    %255 = arith.index_cast %254 : i32 to index
    %256 = memref.load %arg2[%255] : memref<256xi32, #tpu.memory_space<smem>>
    %c0_237 = arith.constant 0 : index
    %257 = arith.index_cast %256 : i32 to index
    %c0_238 = arith.constant 0 : index
    %c0_239 = arith.constant 0 : index
    %258 = vector.load %arg3[%c0_237, %257, %c0_238, %c0_239] : memref<1x16x8x128xf32, #tpu.memory_space<vmem>>, vector<1x1x8x128xf32>
    %259 = vector.shape_cast %258 : vector<1x1x8x128xf32> to vector<8x128xf32>
    %c0_240 = arith.constant 0 : index
    %c6_241 = arith.constant 6 : index
    %c3_242 = arith.constant 3 : index
    %c0_243 = arith.constant 0 : index
    %c0_244 = arith.constant 0 : index
    %260 = vector.load %arg4[%c0_240, %c6_241, %c3_242, %c0_243, %c0_244] : memref<1x16x4x8x128xf32, #tpu.memory_space<vmem>>, vector<1x1x1x8x128xf32>
    %261 = vector.shape_cast %260 : vector<1x1x1x8x128xf32> to vector<8x128xf32>
    %262 = vector.shape_cast %259 : vector<8x128xf32> to vector<1x1x1x8x128xf32>
    tpu.vector_store %arg4[%c0_240, %c6_241, %c3_242, %c0_243, %c0_244], %262 {strides = array<i32>} : memref<1x16x4x8x128xf32, #tpu.memory_space<vmem>>, vector<1x1x1x8x128xf32>,
    %c28_i32 = arith.constant 28 : i32
    %263 = arith.addi %3, %c28_i32 : i32
    %c0_i32_245 = arith.constant 0 : i32
    %264 = arith.addi %263, %c0_i32_245 : i32
    %265 = arith.index_cast %264 : i32 to index
    %266 = memref.load %arg2[%265] : memref<256xi32, #tpu.memory_space<smem>>
    %c0_246 = arith.constant 0 : index
    %267 = arith.index_cast %266 : i32 to index
    %c0_247 = arith.constant 0 : index
    %c0_248 = arith.constant 0 : index
    %268 = vector.load %arg3[%c0_246, %267, %c0_247, %c0_248] : memref<1x16x8x128xf32, #tpu.memory_space<vmem>>, vector<1x1x8x128xf32>
    %269 = vector.shape_cast %268 : vector<1x1x8x128xf32> to vector<8x128xf32>
    %c0_249 = arith.constant 0 : index
    %c7 = arith.constant 7 : index
    %c0_250 = arith.constant 0 : index
    %c0_251 = arith.constant 0 : index
    %c0_252 = arith.constant 0 : index
    %270 = vector.load %arg4[%c0_249, %c7, %c0_250, %c0_251, %c0_252] : memref<1x16x4x8x128xf32, #tpu.memory_space<vmem>>, vector<1x1x1x8x128xf32>
    %271 = vector.shape_cast %270 : vector<1x1x1x8x128xf32> to vector<8x128xf32>
    %272 = vector.shape_cast %269 : vector<8x128xf32> to vector<1x1x1x8x128xf32>
    tpu.vector_store %arg4[%c0_249, %c7, %c0_250, %c0_251, %c0_252], %272 {strides = array<i32>} : memref<1x16x4x8x128xf32, #tpu.memory_space<vmem>>, vector<1x1x1x8x128xf32>,
    %c1_i32_253 = arith.constant 1 : i32
    %273 = arith.addi %263, %c1_i32_253 : i32
    %274 = arith.index_cast %273 : i32 to index
    %275 = memref.load %arg2[%274] : memref<256xi32, #tpu.memory_space<smem>>
    %c0_254 = arith.constant 0 : index
    %276 = arith.index_cast %275 : i32 to index
    %c0_255 = arith.constant 0 : index
    %c0_256 = arith.constant 0 : index
    %277 = vector.load %arg3[%c0_254, %276, %c0_255, %c0_256] : memref<1x16x8x128xf32, #tpu.memory_space<vmem>>, vector<1x1x8x128xf32>
    %278 = vector.shape_cast %277 : vector<1x1x8x128xf32> to vector<8x128xf32>
    %c0_257 = arith.constant 0 : index
    %c7_258 = arith.constant 7 : index
    %c1_259 = arith.constant 1 : index
    %c0_260 = arith.constant 0 : index
    %c0_261 = arith.constant 0 : index
    %279 = vector.load %arg4[%c0_257, %c7_258, %c1_259, %c0_260, %c0_261] : memref<1x16x4x8x128xf32, #tpu.memory_space<vmem>>, vector<1x1x1x8x128xf32>
    %280 = vector.shape_cast %279 : vector<1x1x1x8x128xf32> to vector<8x128xf32>
    %281 = vector.shape_cast %278 : vector<8x128xf32> to vector<1x1x1x8x128xf32>
    tpu.vector_store %arg4[%c0_257, %c7_258, %c1_259, %c0_260, %c0_261], %281 {strides = array<i32>} : memref<1x16x4x8x128xf32, #tpu.memory_space<vmem>>, vector<1x1x1x8x128xf32>,
    %c2_i32_262 = arith.constant 2 : i32
    %282 = arith.addi %263, %c2_i32_262 : i32
    %283 = arith.index_cast %282 : i32 to index
    %284 = memref.load %arg2[%283] : memref<256xi32, #tpu.memory_space<smem>>
    %c0_263 = arith.constant 0 : index
    %285 = arith.index_cast %284 : i32 to index
    %c0_264 = arith.constant 0 : index
    %c0_265 = arith.constant 0 : index
    %286 = vector.load %arg3[%c0_263, %285, %c0_264, %c0_265] : memref<1x16x8x128xf32, #tpu.memory_space<vmem>>, vector<1x1x8x128xf32>
    %287 = vector.shape_cast %286 : vector<1x1x8x128xf32> to vector<8x128xf32>
    %c0_266 = arith.constant 0 : index
    %c7_267 = arith.constant 7 : index
    %c2_268 = arith.constant 2 : index
    %c0_269 = arith.constant 0 : index
    %c0_270 = arith.constant 0 : index
    %288 = vector.load %arg4[%c0_266, %c7_267, %c2_268, %c0_269, %c0_270] : memref<1x16x4x8x128xf32, #tpu.memory_space<vmem>>, vector<1x1x1x8x128xf32>
    %289 = vector.shape_cast %288 : vector<1x1x1x8x128xf32> to vector<8x128xf32>
    %290 = vector.shape_cast %287 : vector<8x128xf32> to vector<1x1x1x8x128xf32>
    tpu.vector_store %arg4[%c0_266, %c7_267, %c2_268, %c0_269, %c0_270], %290 {strides = array<i32>} : memref<1x16x4x8x128xf32, #tpu.memory_space<vmem>>, vector<1x1x1x8x128xf32>,
    %c3_i32_271 = arith.constant 3 : i32
    %291 = arith.addi %263, %c3_i32_271 : i32
    %292 = arith.index_cast %291 : i32 to index
    %293 = memref.load %arg2[%292] : memref<256xi32, #tpu.memory_space<smem>>
    %c0_272 = arith.constant 0 : index
    %294 = arith.index_cast %293 : i32 to index
    %c0_273 = arith.constant 0 : index
    %c0_274 = arith.constant 0 : index
    %295 = vector.load %arg3[%c0_272, %294, %c0_273, %c0_274] : memref<1x16x8x128xf32, #tpu.memory_space<vmem>>, vector<1x1x8x128xf32>
    %296 = vector.shape_cast %295 : vector<1x1x8x128xf32> to vector<8x128xf32>
    %c0_275 = arith.constant 0 : index
    %c7_276 = arith.constant 7 : index
    %c3_277 = arith.constant 3 : index
    %c0_278 = arith.constant 0 : index
    %c0_279 = arith.constant 0 : index
    %297 = vector.load %arg4[%c0_275, %c7_276, %c3_277, %c0_278, %c0_279] : memref<1x16x4x8x128xf32, #tpu.memory_space<vmem>>, vector<1x1x1x8x128xf32>
    %298 = vector.shape_cast %297 : vector<1x1x1x8x128xf32> to vector<8x128xf32>
    %299 = vector.shape_cast %296 : vector<8x128xf32> to vector<1x1x1x8x128xf32>
    tpu.vector_store %arg4[%c0_275, %c7_276, %c3_277, %c0_278, %c0_279], %299 {strides = array<i32>} : memref<1x16x4x8x128xf32, #tpu.memory_space<vmem>>, vector<1x1x1x8x128xf32>,
    %c32_i32 = arith.constant 32 : i32
    %300 = arith.addi %3, %c32_i32 : i32
    %c0_i32_280 = arith.constant 0 : i32
    %301 = arith.addi %300, %c0_i32_280 : i32
    %302 = arith.index_cast %301 : i32 to index
    %303 = memref.load %arg2[%302] : memref<256xi32, #tpu.memory_space<smem>>
    %c0_281 = arith.constant 0 : index
    %304 = arith.index_cast %303 : i32 to index
    %c0_282 = arith.constant 0 : index
    %c0_283 = arith.constant 0 : index
    %305 = vector.load %arg3[%c0_281, %304, %c0_282, %c0_283] : memref<1x16x8x128xf32, #tpu.memory_space<vmem>>, vector<1x1x8x128xf32>
    %306 = vector.shape_cast %305 : vector<1x1x8x128xf32> to vector<8x128xf32>
    %c0_284 = arith.constant 0 : index
    %c8 = arith.constant 8 : index
    %c0_285 = arith.constant 0 : index
    %c0_286 = arith.constant 0 : index
    %c0_287 = arith.constant 0 : index
    %307 = vector.load %arg4[%c0_284, %c8, %c0_285, %c0_286, %c0_287] : memref<1x16x4x8x128xf32, #tpu.memory_space<vmem>>, vector<1x1x1x8x128xf32>
    %308 = vector.shape_cast %307 : vector<1x1x1x8x128xf32> to vector<8x128xf32>
    %309 = vector.shape_cast %306 : vector<8x128xf32> to vector<1x1x1x8x128xf32>
    tpu.vector_store %arg4[%c0_284, %c8, %c0_285, %c0_286, %c0_287], %309 {strides = array<i32>} : memref<1x16x4x8x128xf32, #tpu.memory_space<vmem>>, vector<1x1x1x8x128xf32>,
    %c1_i32_288 = arith.constant 1 : i32
    %310 = arith.addi %300, %c1_i32_288 : i32
    %311 = arith.index_cast %310 : i32 to index
    %312 = memref.load %arg2[%311] : memref<256xi32, #tpu.memory_space<smem>>
    %c0_289 = arith.constant 0 : index
    %313 = arith.index_cast %312 : i32 to index
    %c0_290 = arith.constant 0 : index
    %c0_291 = arith.constant 0 : index
    %314 = vector.load %arg3[%c0_289, %313, %c0_290, %c0_291] : memref<1x16x8x128xf32, #tpu.memory_space<vmem>>, vector<1x1x8x128xf32>
    %315 = vector.shape_cast %314 : vector<1x1x8x128xf32> to vector<8x128xf32>
    %c0_292 = arith.constant 0 : index
    %c8_293 = arith.constant 8 : index
    %c1_294 = arith.constant 1 : index
    %c0_295 = arith.constant 0 : index
    %c0_296 = arith.constant 0 : index
    %316 = vector.load %arg4[%c0_292, %c8_293, %c1_294, %c0_295, %c0_296] : memref<1x16x4x8x128xf32, #tpu.memory_space<vmem>>, vector<1x1x1x8x128xf32>
    %317 = vector.shape_cast %316 : vector<1x1x1x8x128xf32> to vector<8x128xf32>
    %318 = vector.shape_cast %315 : vector<8x128xf32> to vector<1x1x1x8x128xf32>
    tpu.vector_store %arg4[%c0_292, %c8_293, %c1_294, %c0_295, %c0_296], %318 {strides = array<i32>} : memref<1x16x4x8x128xf32, #tpu.memory_space<vmem>>, vector<1x1x1x8x128xf32>,
    %c2_i32_297 = arith.constant 2 : i32
    %319 = arith.addi %300, %c2_i32_297 : i32
    %320 = arith.index_cast %319 : i32 to index
    %321 = memref.load %arg2[%320] : memref<256xi32, #tpu.memory_space<smem>>
    %c0_298 = arith.constant 0 : index
    %322 = arith.index_cast %321 : i32 to index
    %c0_299 = arith.constant 0 : index
    %c0_300 = arith.constant 0 : index
    %323 = vector.load %arg3[%c0_298, %322, %c0_299, %c0_300] : memref<1x16x8x128xf32, #tpu.memory_space<vmem>>, vector<1x1x8x128xf32>
    %324 = vector.shape_cast %323 : vector<1x1x8x128xf32> to vector<8x128xf32>
    %c0_301 = arith.constant 0 : index
    %c8_302 = arith.constant 8 : index
    %c2_303 = arith.constant 2 : index
    %c0_304 = arith.constant 0 : index
    %c0_305 = arith.constant 0 : index
    %325 = vector.load %arg4[%c0_301, %c8_302, %c2_303, %c0_304, %c0_305] : memref<1x16x4x8x128xf32, #tpu.memory_space<vmem>>, vector<1x1x1x8x128xf32>
    %326 = vector.shape_cast %325 : vector<1x1x1x8x128xf32> to vector<8x128xf32>
    %327 = vector.shape_cast %324 : vector<8x128xf32> to vector<1x1x1x8x128xf32>
    tpu.vector_store %arg4[%c0_301, %c8_302, %c2_303, %c0_304, %c0_305], %327 {strides = array<i32>} : memref<1x16x4x8x128xf32, #tpu.memory_space<vmem>>, vector<1x1x1x8x128xf32>,
    %c3_i32_306 = arith.constant 3 : i32
    %328 = arith.addi %300, %c3_i32_306 : i32
    %329 = arith.index_cast %328 : i32 to index
    %330 = memref.load %arg2[%329] : memref<256xi32, #tpu.memory_space<smem>>
    %c0_307 = arith.constant 0 : index
    %331 = arith.index_cast %330 : i32 to index
    %c0_308 = arith.constant 0 : index
    %c0_309 = arith.constant 0 : index
    %332 = vector.load %arg3[%c0_307, %331, %c0_308, %c0_309] : memref<1x16x8x128xf32, #tpu.memory_space<vmem>>, vector<1x1x8x128xf32>
    %333 = vector.shape_cast %332 : vector<1x1x8x128xf32> to vector<8x128xf32>
    %c0_310 = arith.constant 0 : index
    %c8_311 = arith.constant 8 : index
    %c3_312 = arith.constant 3 : index
    %c0_313 = arith.constant 0 : index
    %c0_314 = arith.constant 0 : index
    %334 = vector.load %arg4[%c0_310, %c8_311, %c3_312, %c0_313, %c0_314] : memref<1x16x4x8x128xf32, #tpu.memory_space<vmem>>, vector<1x1x1x8x128xf32>
    %335 = vector.shape_cast %334 : vector<1x1x1x8x128xf32> to vector<8x128xf32>
    %336 = vector.shape_cast %333 : vector<8x128xf32> to vector<1x1x1x8x128xf32>
    tpu.vector_store %arg4[%c0_310, %c8_311, %c3_312, %c0_313, %c0_314], %336 {strides = array<i32>} : memref<1x16x4x8x128xf32, #tpu.memory_space<vmem>>, vector<1x1x1x8x128xf32>,
    %c36_i32 = arith.constant 36 : i32
    %337 = arith.addi %3, %c36_i32 : i32
    %c0_i32_315 = arith.constant 0 : i32
    %338 = arith.addi %337, %c0_i32_315 : i32
    %339 = arith.index_cast %338 : i32 to index
    %340 = memref.load %arg2[%339] : memref<256xi32, #tpu.memory_space<smem>>
    %c0_316 = arith.constant 0 : index
    %341 = arith.index_cast %340 : i32 to index
    %c0_317 = arith.constant 0 : index
    %c0_318 = arith.constant 0 : index
    %342 = vector.load %arg3[%c0_316, %341, %c0_317, %c0_318] : memref<1x16x8x128xf32, #tpu.memory_space<vmem>>, vector<1x1x8x128xf32>
    %343 = vector.shape_cast %342 : vector<1x1x8x128xf32> to vector<8x128xf32>
    %c0_319 = arith.constant 0 : index
    %c9 = arith.constant 9 : index
    %c0_320 = arith.constant 0 : index
    %c0_321 = arith.constant 0 : index
    %c0_322 = arith.constant 0 : index
    %344 = vector.load %arg4[%c0_319, %c9, %c0_320, %c0_321, %c0_322] : memref<1x16x4x8x128xf32, #tpu.memory_space<vmem>>, vector<1x1x1x8x128xf32>
    %345 = vector.shape_cast %344 : vector<1x1x1x8x128xf32> to vector<8x128xf32>
    %346 = vector.shape_cast %343 : vector<8x128xf32> to vector<1x1x1x8x128xf32>
    tpu.vector_store %arg4[%c0_319, %c9, %c0_320, %c0_321, %c0_322], %346 {strides = array<i32>} : memref<1x16x4x8x128xf32, #tpu.memory_space<vmem>>, vector<1x1x1x8x128xf32>,
    %c1_i32_323 = arith.constant 1 : i32
    %347 = arith.addi %337, %c1_i32_323 : i32
    %348 = arith.index_cast %347 : i32 to index
    %349 = memref.load %arg2[%348] : memref<256xi32, #tpu.memory_space<smem>>
    %c0_324 = arith.constant 0 : index
    %350 = arith.index_cast %349 : i32 to index
    %c0_325 = arith.constant 0 : index
    %c0_326 = arith.constant 0 : index
    %351 = vector.load %arg3[%c0_324, %350, %c0_325, %c0_326] : memref<1x16x8x128xf32, #tpu.memory_space<vmem>>, vector<1x1x8x128xf32>
    %352 = vector.shape_cast %351 : vector<1x1x8x128xf32> to vector<8x128xf32>
    %c0_327 = arith.constant 0 : index
    %c9_328 = arith.constant 9 : index
    %c1_329 = arith.constant 1 : index
    %c0_330 = arith.constant 0 : index
    %c0_331 = arith.constant 0 : index
    %353 = vector.load %arg4[%c0_327, %c9_328, %c1_329, %c0_330, %c0_331] : memref<1x16x4x8x128xf32, #tpu.memory_space<vmem>>, vector<1x1x1x8x128xf32>
    %354 = vector.shape_cast %353 : vector<1x1x1x8x128xf32> to vector<8x128xf32>
    %355 = vector.shape_cast %352 : vector<8x128xf32> to vector<1x1x1x8x128xf32>
    tpu.vector_store %arg4[%c0_327, %c9_328, %c1_329, %c0_330, %c0_331], %355 {strides = array<i32>} : memref<1x16x4x8x128xf32, #tpu.memory_space<vmem>>, vector<1x1x1x8x128xf32>,
    %c2_i32_332 = arith.constant 2 : i32
    %356 = arith.addi %337, %c2_i32_332 : i32
    %357 = arith.index_cast %356 : i32 to index
    %358 = memref.load %arg2[%357] : memref<256xi32, #tpu.memory_space<smem>>
    %c0_333 = arith.constant 0 : index
    %359 = arith.index_cast %358 : i32 to index
    %c0_334 = arith.constant 0 : index
    %c0_335 = arith.constant 0 : index
    %360 = vector.load %arg3[%c0_333, %359, %c0_334, %c0_335] : memref<1x16x8x128xf32, #tpu.memory_space<vmem>>, vector<1x1x8x128xf32>
    %361 = vector.shape_cast %360 : vector<1x1x8x128xf32> to vector<8x128xf32>
    %c0_336 = arith.constant 0 : index
    %c9_337 = arith.constant 9 : index
    %c2_338 = arith.constant 2 : index
    %c0_339 = arith.constant 0 : index
    %c0_340 = arith.constant 0 : index
    %362 = vector.load %arg4[%c0_336, %c9_337, %c2_338, %c0_339, %c0_340] : memref<1x16x4x8x128xf32, #tpu.memory_space<vmem>>, vector<1x1x1x8x128xf32>
    %363 = vector.shape_cast %362 : vector<1x1x1x8x128xf32> to vector<8x128xf32>
    %364 = vector.shape_cast %361 : vector<8x128xf32> to vector<1x1x1x8x128xf32>
    tpu.vector_store %arg4[%c0_336, %c9_337, %c2_338, %c0_339, %c0_340], %364 {strides = array<i32>} : memref<1x16x4x8x128xf32, #tpu.memory_space<vmem>>, vector<1x1x1x8x128xf32>,
    %c3_i32_341 = arith.constant 3 : i32
    %365 = arith.addi %337, %c3_i32_341 : i32
    %366 = arith.index_cast %365 : i32 to index
    %367 = memref.load %arg2[%366] : memref<256xi32, #tpu.memory_space<smem>>
    %c0_342 = arith.constant 0 : index
    %368 = arith.index_cast %367 : i32 to index
    %c0_343 = arith.constant 0 : index
    %c0_344 = arith.constant 0 : index
    %369 = vector.load %arg3[%c0_342, %368, %c0_343, %c0_344] : memref<1x16x8x128xf32, #tpu.memory_space<vmem>>, vector<1x1x8x128xf32>
    %370 = vector.shape_cast %369 : vector<1x1x8x128xf32> to vector<8x128xf32>
    %c0_345 = arith.constant 0 : index
    %c9_346 = arith.constant 9 : index
    %c3_347 = arith.constant 3 : index
    %c0_348 = arith.constant 0 : index
    %c0_349 = arith.constant 0 : index
    %371 = vector.load %arg4[%c0_345, %c9_346, %c3_347, %c0_348, %c0_349] : memref<1x16x4x8x128xf32, #tpu.memory_space<vmem>>, vector<1x1x1x8x128xf32>
    %372 = vector.shape_cast %371 : vector<1x1x1x8x128xf32> to vector<8x128xf32>
    %373 = vector.shape_cast %370 : vector<8x128xf32> to vector<1x1x1x8x128xf32>
    tpu.vector_store %arg4[%c0_345, %c9_346, %c3_347, %c0_348, %c0_349], %373 {strides = array<i32>} : memref<1x16x4x8x128xf32, #tpu.memory_space<vmem>>, vector<1x1x1x8x128xf32>,
    %c40_i32 = arith.constant 40 : i32
    %374 = arith.addi %3, %c40_i32 : i32
    %c0_i32_350 = arith.constant 0 : i32
    %375 = arith.addi %374, %c0_i32_350 : i32
    %376 = arith.index_cast %375 : i32 to index
    %377 = memref.load %arg2[%376] : memref<256xi32, #tpu.memory_space<smem>>
    %c0_351 = arith.constant 0 : index
    %378 = arith.index_cast %377 : i32 to index
    %c0_352 = arith.constant 0 : index
    %c0_353 = arith.constant 0 : index
    %379 = vector.load %arg3[%c0_351, %378, %c0_352, %c0_353] : memref<1x16x8x128xf32, #tpu.memory_space<vmem>>, vector<1x1x8x128xf32>
    %380 = vector.shape_cast %379 : vector<1x1x8x128xf32> to vector<8x128xf32>
    %c0_354 = arith.constant 0 : index
    %c10 = arith.constant 10 : index
    %c0_355 = arith.constant 0 : index
    %c0_356 = arith.constant 0 : index
    %c0_357 = arith.constant 0 : index
    %381 = vector.load %arg4[%c0_354, %c10, %c0_355, %c0_356, %c0_357] : memref<1x16x4x8x128xf32, #tpu.memory_space<vmem>>, vector<1x1x1x8x128xf32>
    %382 = vector.shape_cast %381 : vector<1x1x1x8x128xf32> to vector<8x128xf32>
    %383 = vector.shape_cast %380 : vector<8x128xf32> to vector<1x1x1x8x128xf32>
    tpu.vector_store %arg4[%c0_354, %c10, %c0_355, %c0_356, %c0_357], %383 {strides = array<i32>} : memref<1x16x4x8x128xf32, #tpu.memory_space<vmem>>, vector<1x1x1x8x128xf32>,
    %c1_i32_358 = arith.constant 1 : i32
    %384 = arith.addi %374, %c1_i32_358 : i32
    %385 = arith.index_cast %384 : i32 to index
    %386 = memref.load %arg2[%385] : memref<256xi32, #tpu.memory_space<smem>>
    %c0_359 = arith.constant 0 : index
    %387 = arith.index_cast %386 : i32 to index
    %c0_360 = arith.constant 0 : index
    %c0_361 = arith.constant 0 : index
    %388 = vector.load %arg3[%c0_359, %387, %c0_360, %c0_361] : memref<1x16x8x128xf32, #tpu.memory_space<vmem>>, vector<1x1x8x128xf32>
    %389 = vector.shape_cast %388 : vector<1x1x8x128xf32> to vector<8x128xf32>
    %c0_362 = arith.constant 0 : index
    %c10_363 = arith.constant 10 : index
    %c1_364 = arith.constant 1 : index
    %c0_365 = arith.constant 0 : index
    %c0_366 = arith.constant 0 : index
    %390 = vector.load %arg4[%c0_362, %c10_363, %c1_364, %c0_365, %c0_366] : memref<1x16x4x8x128xf32, #tpu.memory_space<vmem>>, vector<1x1x1x8x128xf32>
    %391 = vector.shape_cast %390 : vector<1x1x1x8x128xf32> to vector<8x128xf32>
    %392 = vector.shape_cast %389 : vector<8x128xf32> to vector<1x1x1x8x128xf32>
    tpu.vector_store %arg4[%c0_362, %c10_363, %c1_364, %c0_365, %c0_366], %392 {strides = array<i32>} : memref<1x16x4x8x128xf32, #tpu.memory_space<vmem>>, vector<1x1x1x8x128xf32>,
    %c2_i32_367 = arith.constant 2 : i32
    %393 = arith.addi %374, %c2_i32_367 : i32
    %394 = arith.index_cast %393 : i32 to index
    %395 = memref.load %arg2[%394] : memref<256xi32, #tpu.memory_space<smem>>
    %c0_368 = arith.constant 0 : index
    %396 = arith.index_cast %395 : i32 to index
    %c0_369 = arith.constant 0 : index
    %c0_370 = arith.constant 0 : index
    %397 = vector.load %arg3[%c0_368, %396, %c0_369, %c0_370] : memref<1x16x8x128xf32, #tpu.memory_space<vmem>>, vector<1x1x8x128xf32>
    %398 = vector.shape_cast %397 : vector<1x1x8x128xf32> to vector<8x128xf32>
    %c0_371 = arith.constant 0 : index
    %c10_372 = arith.constant 10 : index
    %c2_373 = arith.constant 2 : index
    %c0_374 = arith.constant 0 : index
    %c0_375 = arith.constant 0 : index
    %399 = vector.load %arg4[%c0_371, %c10_372, %c2_373, %c0_374, %c0_375] : memref<1x16x4x8x128xf32, #tpu.memory_space<vmem>>, vector<1x1x1x8x128xf32>
    %400 = vector.shape_cast %399 : vector<1x1x1x8x128xf32> to vector<8x128xf32>
    %401 = vector.shape_cast %398 : vector<8x128xf32> to vector<1x1x1x8x128xf32>
    tpu.vector_store %arg4[%c0_371, %c10_372, %c2_373, %c0_374, %c0_375], %401 {strides = array<i32>} : memref<1x16x4x8x128xf32, #tpu.memory_space<vmem>>, vector<1x1x1x8x128xf32>,
    %c3_i32_376 = arith.constant 3 : i32
    %402 = arith.addi %374, %c3_i32_376 : i32
    %403 = arith.index_cast %402 : i32 to index
    %404 = memref.load %arg2[%403] : memref<256xi32, #tpu.memory_space<smem>>
    %c0_377 = arith.constant 0 : index
    %405 = arith.index_cast %404 : i32 to index
    %c0_378 = arith.constant 0 : index
    %c0_379 = arith.constant 0 : index
    %406 = vector.load %arg3[%c0_377, %405, %c0_378, %c0_379] : memref<1x16x8x128xf32, #tpu.memory_space<vmem>>, vector<1x1x8x128xf32>
    %407 = vector.shape_cast %406 : vector<1x1x8x128xf32> to vector<8x128xf32>
    %c0_380 = arith.constant 0 : index
    %c10_381 = arith.constant 10 : index
    %c3_382 = arith.constant 3 : index
    %c0_383 = arith.constant 0 : index
    %c0_384 = arith.constant 0 : index
    %408 = vector.load %arg4[%c0_380, %c10_381, %c3_382, %c0_383, %c0_384] : memref<1x16x4x8x128xf32, #tpu.memory_space<vmem>>, vector<1x1x1x8x128xf32>
    %409 = vector.shape_cast %408 : vector<1x1x1x8x128xf32> to vector<8x128xf32>
    %410 = vector.shape_cast %407 : vector<8x128xf32> to vector<1x1x1x8x128xf32>
    tpu.vector_store %arg4[%c0_380, %c10_381, %c3_382, %c0_383, %c0_384], %410 {strides = array<i32>} : memref<1x16x4x8x128xf32, #tpu.memory_space<vmem>>, vector<1x1x1x8x128xf32>,
    %c44_i32 = arith.constant 44 : i32
    %411 = arith.addi %3, %c44_i32 : i32
    %c0_i32_385 = arith.constant 0 : i32
    %412 = arith.addi %411, %c0_i32_385 : i32
    %413 = arith.index_cast %412 : i32 to index
    %414 = memref.load %arg2[%413] : memref<256xi32, #tpu.memory_space<smem>>
    %c0_386 = arith.constant 0 : index
    %415 = arith.index_cast %414 : i32 to index
    %c0_387 = arith.constant 0 : index
    %c0_388 = arith.constant 0 : index
    %416 = vector.load %arg3[%c0_386, %415, %c0_387, %c0_388] : memref<1x16x8x128xf32, #tpu.memory_space<vmem>>, vector<1x1x8x128xf32>
    %417 = vector.shape_cast %416 : vector<1x1x8x128xf32> to vector<8x128xf32>
    %c0_389 = arith.constant 0 : index
    %c11 = arith.constant 11 : index
    %c0_390 = arith.constant 0 : index
    %c0_391 = arith.constant 0 : index
    %c0_392 = arith.constant 0 : index
    %418 = vector.load %arg4[%c0_389, %c11, %c0_390, %c0_391, %c0_392] : memref<1x16x4x8x128xf32, #tpu.memory_space<vmem>>, vector<1x1x1x8x128xf32>
    %419 = vector.shape_cast %418 : vector<1x1x1x8x128xf32> to vector<8x128xf32>
    %420 = vector.shape_cast %417 : vector<8x128xf32> to vector<1x1x1x8x128xf32>
    tpu.vector_store %arg4[%c0_389, %c11, %c0_390, %c0_391, %c0_392], %420 {strides = array<i32>} : memref<1x16x4x8x128xf32, #tpu.memory_space<vmem>>, vector<1x1x1x8x128xf32>,
    %c1_i32_393 = arith.constant 1 : i32
    %421 = arith.addi %411, %c1_i32_393 : i32
    %422 = arith.index_cast %421 : i32 to index
    %423 = memref.load %arg2[%422] : memref<256xi32, #tpu.memory_space<smem>>
    %c0_394 = arith.constant 0 : index
    %424 = arith.index_cast %423 : i32 to index
    %c0_395 = arith.constant 0 : index
    %c0_396 = arith.constant 0 : index
    %425 = vector.load %arg3[%c0_394, %424, %c0_395, %c0_396] : memref<1x16x8x128xf32, #tpu.memory_space<vmem>>, vector<1x1x8x128xf32>
    %426 = vector.shape_cast %425 : vector<1x1x8x128xf32> to vector<8x128xf32>
    %c0_397 = arith.constant 0 : index
    %c11_398 = arith.constant 11 : index
    %c1_399 = arith.constant 1 : index
    %c0_400 = arith.constant 0 : index
    %c0_401 = arith.constant 0 : index
    %427 = vector.load %arg4[%c0_397, %c11_398, %c1_399, %c0_400, %c0_401] : memref<1x16x4x8x128xf32, #tpu.memory_space<vmem>>, vector<1x1x1x8x128xf32>
    %428 = vector.shape_cast %427 : vector<1x1x1x8x128xf32> to vector<8x128xf32>
    %429 = vector.shape_cast %426 : vector<8x128xf32> to vector<1x1x1x8x128xf32>
    tpu.vector_store %arg4[%c0_397, %c11_398, %c1_399, %c0_400, %c0_401], %429 {strides = array<i32>} : memref<1x16x4x8x128xf32, #tpu.memory_space<vmem>>, vector<1x1x1x8x128xf32>,
    %c2_i32_402 = arith.constant 2 : i32
    %430 = arith.addi %411, %c2_i32_402 : i32
    %431 = arith.index_cast %430 : i32 to index
    %432 = memref.load %arg2[%431] : memref<256xi32, #tpu.memory_space<smem>>
    %c0_403 = arith.constant 0 : index
    %433 = arith.index_cast %432 : i32 to index
    %c0_404 = arith.constant 0 : index
    %c0_405 = arith.constant 0 : index
    %434 = vector.load %arg3[%c0_403, %433, %c0_404, %c0_405] : memref<1x16x8x128xf32, #tpu.memory_space<vmem>>, vector<1x1x8x128xf32>
    %435 = vector.shape_cast %434 : vector<1x1x8x128xf32> to vector<8x128xf32>
    %c0_406 = arith.constant 0 : index
    %c11_407 = arith.constant 11 : index
    %c2_408 = arith.constant 2 : index
    %c0_409 = arith.constant 0 : index
    %c0_410 = arith.constant 0 : index
    %436 = vector.load %arg4[%c0_406, %c11_407, %c2_408, %c0_409, %c0_410] : memref<1x16x4x8x128xf32, #tpu.memory_space<vmem>>, vector<1x1x1x8x128xf32>
    %437 = vector.shape_cast %436 : vector<1x1x1x8x128xf32> to vector<8x128xf32>
    %438 = vector.shape_cast %435 : vector<8x128xf32> to vector<1x1x1x8x128xf32>
    tpu.vector_store %arg4[%c0_406, %c11_407, %c2_408, %c0_409, %c0_410], %438 {strides = array<i32>} : memref<1x16x4x8x128xf32, #tpu.memory_space<vmem>>, vector<1x1x1x8x128xf32>,
    %c3_i32_411 = arith.constant 3 : i32
    %439 = arith.addi %411, %c3_i32_411 : i32
    %440 = arith.index_cast %439 : i32 to index
    %441 = memref.load %arg2[%440] : memref<256xi32, #tpu.memory_space<smem>>
    %c0_412 = arith.constant 0 : index
    %442 = arith.index_cast %441 : i32 to index
    %c0_413 = arith.constant 0 : index
    %c0_414 = arith.constant 0 : index
    %443 = vector.load %arg3[%c0_412, %442, %c0_413, %c0_414] : memref<1x16x8x128xf32, #tpu.memory_space<vmem>>, vector<1x1x8x128xf32>
    %444 = vector.shape_cast %443 : vector<1x1x8x128xf32> to vector<8x128xf32>
    %c0_415 = arith.constant 0 : index
    %c11_416 = arith.constant 11 : index
    %c3_417 = arith.constant 3 : index
    %c0_418 = arith.constant 0 : index
    %c0_419 = arith.constant 0 : index
    %445 = vector.load %arg4[%c0_415, %c11_416, %c3_417, %c0_418, %c0_419] : memref<1x16x4x8x128xf32, #tpu.memory_space<vmem>>, vector<1x1x1x8x128xf32>
    %446 = vector.shape_cast %445 : vector<1x1x1x8x128xf32> to vector<8x128xf32>
    %447 = vector.shape_cast %444 : vector<8x128xf32> to vector<1x1x1x8x128xf32>
    tpu.vector_store %arg4[%c0_415, %c11_416, %c3_417, %c0_418, %c0_419], %447 {strides = array<i32>} : memref<1x16x4x8x128xf32, #tpu.memory_space<vmem>>, vector<1x1x1x8x128xf32>,
    %c48_i32 = arith.constant 48 : i32
    %448 = arith.addi %3, %c48_i32 : i32
    %c0_i32_420 = arith.constant 0 : i32
    %449 = arith.addi %448, %c0_i32_420 : i32
    %450 = arith.index_cast %449 : i32 to index
    %451 = memref.load %arg2[%450] : memref<256xi32, #tpu.memory_space<smem>>
    %c0_421 = arith.constant 0 : index
    %452 = arith.index_cast %451 : i32 to index
    %c0_422 = arith.constant 0 : index
    %c0_423 = arith.constant 0 : index
    %453 = vector.load %arg3[%c0_421, %452, %c0_422, %c0_423] : memref<1x16x8x128xf32, #tpu.memory_space<vmem>>, vector<1x1x8x128xf32>
    %454 = vector.shape_cast %453 : vector<1x1x8x128xf32> to vector<8x128xf32>
    %c0_424 = arith.constant 0 : index
    %c12 = arith.constant 12 : index
    %c0_425 = arith.constant 0 : index
    %c0_426 = arith.constant 0 : index
    %c0_427 = arith.constant 0 : index
    %455 = vector.load %arg4[%c0_424, %c12, %c0_425, %c0_426, %c0_427] : memref<1x16x4x8x128xf32, #tpu.memory_space<vmem>>, vector<1x1x1x8x128xf32>
    %456 = vector.shape_cast %455 : vector<1x1x1x8x128xf32> to vector<8x128xf32>
    %457 = vector.shape_cast %454 : vector<8x128xf32> to vector<1x1x1x8x128xf32>
    tpu.vector_store %arg4[%c0_424, %c12, %c0_425, %c0_426, %c0_427], %457 {strides = array<i32>} : memref<1x16x4x8x128xf32, #tpu.memory_space<vmem>>, vector<1x1x1x8x128xf32>,
    %c1_i32_428 = arith.constant 1 : i32
    %458 = arith.addi %448, %c1_i32_428 : i32
    %459 = arith.index_cast %458 : i32 to index
    %460 = memref.load %arg2[%459] : memref<256xi32, #tpu.memory_space<smem>>
    %c0_429 = arith.constant 0 : index
    %461 = arith.index_cast %460 : i32 to index
    %c0_430 = arith.constant 0 : index
    %c0_431 = arith.constant 0 : index
    %462 = vector.load %arg3[%c0_429, %461, %c0_430, %c0_431] : memref<1x16x8x128xf32, #tpu.memory_space<vmem>>, vector<1x1x8x128xf32>
    %463 = vector.shape_cast %462 : vector<1x1x8x128xf32> to vector<8x128xf32>
    %c0_432 = arith.constant 0 : index
    %c12_433 = arith.constant 12 : index
    %c1_434 = arith.constant 1 : index
    %c0_435 = arith.constant 0 : index
    %c0_436 = arith.constant 0 : index
    %464 = vector.load %arg4[%c0_432, %c12_433, %c1_434, %c0_435, %c0_436] : memref<1x16x4x8x128xf32, #tpu.memory_space<vmem>>, vector<1x1x1x8x128xf32>
    %465 = vector.shape_cast %464 : vector<1x1x1x8x128xf32> to vector<8x128xf32>
    %466 = vector.shape_cast %463 : vector<8x128xf32> to vector<1x1x1x8x128xf32>
    tpu.vector_store %arg4[%c0_432, %c12_433, %c1_434, %c0_435, %c0_436], %466 {strides = array<i32>} : memref<1x16x4x8x128xf32, #tpu.memory_space<vmem>>, vector<1x1x1x8x128xf32>,
    %c2_i32_437 = arith.constant 2 : i32
    %467 = arith.addi %448, %c2_i32_437 : i32
    %468 = arith.index_cast %467 : i32 to index
    %469 = memref.load %arg2[%468] : memref<256xi32, #tpu.memory_space<smem>>
    %c0_438 = arith.constant 0 : index
    %470 = arith.index_cast %469 : i32 to index
    %c0_439 = arith.constant 0 : index
    %c0_440 = arith.constant 0 : index
    %471 = vector.load %arg3[%c0_438, %470, %c0_439, %c0_440] : memref<1x16x8x128xf32, #tpu.memory_space<vmem>>, vector<1x1x8x128xf32>
    %472 = vector.shape_cast %471 : vector<1x1x8x128xf32> to vector<8x128xf32>
    %c0_441 = arith.constant 0 : index
    %c12_442 = arith.constant 12 : index
    %c2_443 = arith.constant 2 : index
    %c0_444 = arith.constant 0 : index
    %c0_445 = arith.constant 0 : index
    %473 = vector.load %arg4[%c0_441, %c12_442, %c2_443, %c0_444, %c0_445] : memref<1x16x4x8x128xf32, #tpu.memory_space<vmem>>, vector<1x1x1x8x128xf32>
    %474 = vector.shape_cast %473 : vector<1x1x1x8x128xf32> to vector<8x128xf32>
    %475 = vector.shape_cast %472 : vector<8x128xf32> to vector<1x1x1x8x128xf32>
    tpu.vector_store %arg4[%c0_441, %c12_442, %c2_443, %c0_444, %c0_445], %475 {strides = array<i32>} : memref<1x16x4x8x128xf32, #tpu.memory_space<vmem>>, vector<1x1x1x8x128xf32>,
    %c3_i32_446 = arith.constant 3 : i32
    %476 = arith.addi %448, %c3_i32_446 : i32
    %477 = arith.index_cast %476 : i32 to index
    %478 = memref.load %arg2[%477] : memref<256xi32, #tpu.memory_space<smem>>
    %c0_447 = arith.constant 0 : index
    %479 = arith.index_cast %478 : i32 to index
    %c0_448 = arith.constant 0 : index
    %c0_449 = arith.constant 0 : index
    %480 = vector.load %arg3[%c0_447, %479, %c0_448, %c0_449] : memref<1x16x8x128xf32, #tpu.memory_space<vmem>>, vector<1x1x8x128xf32>
    %481 = vector.shape_cast %480 : vector<1x1x8x128xf32> to vector<8x128xf32>
    %c0_450 = arith.constant 0 : index
    %c12_451 = arith.constant 12 : index
    %c3_452 = arith.constant 3 : index
    %c0_453 = arith.constant 0 : index
    %c0_454 = arith.constant 0 : index
    %482 = vector.load %arg4[%c0_450, %c12_451, %c3_452, %c0_453, %c0_454] : memref<1x16x4x8x128xf32, #tpu.memory_space<vmem>>, vector<1x1x1x8x128xf32>
    %483 = vector.shape_cast %482 : vector<1x1x1x8x128xf32> to vector<8x128xf32>
    %484 = vector.shape_cast %481 : vector<8x128xf32> to vector<1x1x1x8x128xf32>
    tpu.vector_store %arg4[%c0_450, %c12_451, %c3_452, %c0_453, %c0_454], %484 {strides = array<i32>} : memref<1x16x4x8x128xf32, #tpu.memory_space<vmem>>, vector<1x1x1x8x128xf32>,
    %c52_i32 = arith.constant 52 : i32
    %485 = arith.addi %3, %c52_i32 : i32
    %c0_i32_455 = arith.constant 0 : i32
    %486 = arith.addi %485, %c0_i32_455 : i32
    %487 = arith.index_cast %486 : i32 to index
    %488 = memref.load %arg2[%487] : memref<256xi32, #tpu.memory_space<smem>>
    %c0_456 = arith.constant 0 : index
    %489 = arith.index_cast %488 : i32 to index
    %c0_457 = arith.constant 0 : index
    %c0_458 = arith.constant 0 : index
    %490 = vector.load %arg3[%c0_456, %489, %c0_457, %c0_458] : memref<1x16x8x128xf32, #tpu.memory_space<vmem>>, vector<1x1x8x128xf32>
    %491 = vector.shape_cast %490 : vector<1x1x8x128xf32> to vector<8x128xf32>
    %c0_459 = arith.constant 0 : index
    %c13 = arith.constant 13 : index
    %c0_460 = arith.constant 0 : index
    %c0_461 = arith.constant 0 : index
    %c0_462 = arith.constant 0 : index
    %492 = vector.load %arg4[%c0_459, %c13, %c0_460, %c0_461, %c0_462] : memref<1x16x4x8x128xf32, #tpu.memory_space<vmem>>, vector<1x1x1x8x128xf32>
    %493 = vector.shape_cast %492 : vector<1x1x1x8x128xf32> to vector<8x128xf32>
    %494 = vector.shape_cast %491 : vector<8x128xf32> to vector<1x1x1x8x128xf32>
    tpu.vector_store %arg4[%c0_459, %c13, %c0_460, %c0_461, %c0_462], %494 {strides = array<i32>} : memref<1x16x4x8x128xf32, #tpu.memory_space<vmem>>, vector<1x1x1x8x128xf32>,
    %c1_i32_463 = arith.constant 1 : i32
    %495 = arith.addi %485, %c1_i32_463 : i32
    %496 = arith.index_cast %495 : i32 to index
    %497 = memref.load %arg2[%496] : memref<256xi32, #tpu.memory_space<smem>>
    %c0_464 = arith.constant 0 : index
    %498 = arith.index_cast %497 : i32 to index
    %c0_465 = arith.constant 0 : index
    %c0_466 = arith.constant 0 : index
    %499 = vector.load %arg3[%c0_464, %498, %c0_465, %c0_466] : memref<1x16x8x128xf32, #tpu.memory_space<vmem>>, vector<1x1x8x128xf32>
    %500 = vector.shape_cast %499 : vector<1x1x8x128xf32> to vector<8x128xf32>
    %c0_467 = arith.constant 0 : index
    %c13_468 = arith.constant 13 : index
    %c1_469 = arith.constant 1 : index
    %c0_470 = arith.constant 0 : index
    %c0_471 = arith.constant 0 : index
    %501 = vector.load %arg4[%c0_467, %c13_468, %c1_469, %c0_470, %c0_471] : memref<1x16x4x8x128xf32, #tpu.memory_space<vmem>>, vector<1x1x1x8x128xf32>
    %502 = vector.shape_cast %501 : vector<1x1x1x8x128xf32> to vector<8x128xf32>
    %503 = vector.shape_cast %500 : vector<8x128xf32> to vector<1x1x1x8x128xf32>
    tpu.vector_store %arg4[%c0_467, %c13_468, %c1_469, %c0_470, %c0_471], %503 {strides = array<i32>} : memref<1x16x4x8x128xf32, #tpu.memory_space<vmem>>, vector<1x1x1x8x128xf32>,
    %c2_i32_472 = arith.constant 2 : i32
    %504 = arith.addi %485, %c2_i32_472 : i32
    %505 = arith.index_cast %504 : i32 to index
    %506 = memref.load %arg2[%505] : memref<256xi32, #tpu.memory_space<smem>>
    %c0_473 = arith.constant 0 : index
    %507 = arith.index_cast %506 : i32 to index
    %c0_474 = arith.constant 0 : index
    %c0_475 = arith.constant 0 : index
    %508 = vector.load %arg3[%c0_473, %507, %c0_474, %c0_475] : memref<1x16x8x128xf32, #tpu.memory_space<vmem>>, vector<1x1x8x128xf32>
    %509 = vector.shape_cast %508 : vector<1x1x8x128xf32> to vector<8x128xf32>
    %c0_476 = arith.constant 0 : index
    %c13_477 = arith.constant 13 : index
    %c2_478 = arith.constant 2 : index
    %c0_479 = arith.constant 0 : index
    %c0_480 = arith.constant 0 : index
    %510 = vector.load %arg4[%c0_476, %c13_477, %c2_478, %c0_479, %c0_480] : memref<1x16x4x8x128xf32, #tpu.memory_space<vmem>>, vector<1x1x1x8x128xf32>
    %511 = vector.shape_cast %510 : vector<1x1x1x8x128xf32> to vector<8x128xf32>
    %512 = vector.shape_cast %509 : vector<8x128xf32> to vector<1x1x1x8x128xf32>
    tpu.vector_store %arg4[%c0_476, %c13_477, %c2_478, %c0_479, %c0_480], %512 {strides = array<i32>} : memref<1x16x4x8x128xf32, #tpu.memory_space<vmem>>, vector<1x1x1x8x128xf32>,
    %c3_i32_481 = arith.constant 3 : i32
    %513 = arith.addi %485, %c3_i32_481 : i32
    %514 = arith.index_cast %513 : i32 to index
    %515 = memref.load %arg2[%514] : memref<256xi32, #tpu.memory_space<smem>>
    %c0_482 = arith.constant 0 : index
    %516 = arith.index_cast %515 : i32 to index
    %c0_483 = arith.constant 0 : index
    %c0_484 = arith.constant 0 : index
    %517 = vector.load %arg3[%c0_482, %516, %c0_483, %c0_484] : memref<1x16x8x128xf32, #tpu.memory_space<vmem>>, vector<1x1x8x128xf32>
    %518 = vector.shape_cast %517 : vector<1x1x8x128xf32> to vector<8x128xf32>
    %c0_485 = arith.constant 0 : index
    %c13_486 = arith.constant 13 : index
    %c3_487 = arith.constant 3 : index
    %c0_488 = arith.constant 0 : index
    %c0_489 = arith.constant 0 : index
    %519 = vector.load %arg4[%c0_485, %c13_486, %c3_487, %c0_488, %c0_489] : memref<1x16x4x8x128xf32, #tpu.memory_space<vmem>>, vector<1x1x1x8x128xf32>
    %520 = vector.shape_cast %519 : vector<1x1x1x8x128xf32> to vector<8x128xf32>
    %521 = vector.shape_cast %518 : vector<8x128xf32> to vector<1x1x1x8x128xf32>
    tpu.vector_store %arg4[%c0_485, %c13_486, %c3_487, %c0_488, %c0_489], %521 {strides = array<i32>} : memref<1x16x4x8x128xf32, #tpu.memory_space<vmem>>, vector<1x1x1x8x128xf32>,
    %c56_i32 = arith.constant 56 : i32
    %522 = arith.addi %3, %c56_i32 : i32
    %c0_i32_490 = arith.constant 0 : i32
    %523 = arith.addi %522, %c0_i32_490 : i32
    %524 = arith.index_cast %523 : i32 to index
    %525 = memref.load %arg2[%524] : memref<256xi32, #tpu.memory_space<smem>>
    %c0_491 = arith.constant 0 : index
    %526 = arith.index_cast %525 : i32 to index
    %c0_492 = arith.constant 0 : index
    %c0_493 = arith.constant 0 : index
    %527 = vector.load %arg3[%c0_491, %526, %c0_492, %c0_493] : memref<1x16x8x128xf32, #tpu.memory_space<vmem>>, vector<1x1x8x128xf32>
    %528 = vector.shape_cast %527 : vector<1x1x8x128xf32> to vector<8x128xf32>
    %c0_494 = arith.constant 0 : index
    %c14 = arith.constant 14 : index
    %c0_495 = arith.constant 0 : index
    %c0_496 = arith.constant 0 : index
    %c0_497 = arith.constant 0 : index
    %529 = vector.load %arg4[%c0_494, %c14, %c0_495, %c0_496, %c0_497] : memref<1x16x4x8x128xf32, #tpu.memory_space<vmem>>, vector<1x1x1x8x128xf32>
    %530 = vector.shape_cast %529 : vector<1x1x1x8x128xf32> to vector<8x128xf32>
    %531 = vector.shape_cast %528 : vector<8x128xf32> to vector<1x1x1x8x128xf32>
    tpu.vector_store %arg4[%c0_494, %c14, %c0_495, %c0_496, %c0_497], %531 {strides = array<i32>} : memref<1x16x4x8x128xf32, #tpu.memory_space<vmem>>, vector<1x1x1x8x128xf32>,
    %c1_i32_498 = arith.constant 1 : i32
    %532 = arith.addi %522, %c1_i32_498 : i32
    %533 = arith.index_cast %532 : i32 to index
    %534 = memref.load %arg2[%533] : memref<256xi32, #tpu.memory_space<smem>>
    %c0_499 = arith.constant 0 : index
    %535 = arith.index_cast %534 : i32 to index
    %c0_500 = arith.constant 0 : index
    %c0_501 = arith.constant 0 : index
    %536 = vector.load %arg3[%c0_499, %535, %c0_500, %c0_501] : memref<1x16x8x128xf32, #tpu.memory_space<vmem>>, vector<1x1x8x128xf32>
    %537 = vector.shape_cast %536 : vector<1x1x8x128xf32> to vector<8x128xf32>
    %c0_502 = arith.constant 0 : index
    %c14_503 = arith.constant 14 : index
    %c1_504 = arith.constant 1 : index
    %c0_505 = arith.constant 0 : index
    %c0_506 = arith.constant 0 : index
    %538 = vector.load %arg4[%c0_502, %c14_503, %c1_504, %c0_505, %c0_506] : memref<1x16x4x8x128xf32, #tpu.memory_space<vmem>>, vector<1x1x1x8x128xf32>
    %539 = vector.shape_cast %538 : vector<1x1x1x8x128xf32> to vector<8x128xf32>
    %540 = vector.shape_cast %537 : vector<8x128xf32> to vector<1x1x1x8x128xf32>
    tpu.vector_store %arg4[%c0_502, %c14_503, %c1_504, %c0_505, %c0_506], %540 {strides = array<i32>} : memref<1x16x4x8x128xf32, #tpu.memory_space<vmem>>, vector<1x1x1x8x128xf32>,
    %c2_i32_507 = arith.constant 2 : i32
    %541 = arith.addi %522, %c2_i32_507 : i32
    %542 = arith.index_cast %541 : i32 to index
    %543 = memref.load %arg2[%542] : memref<256xi32, #tpu.memory_space<smem>>
    %c0_508 = arith.constant 0 : index
    %544 = arith.index_cast %543 : i32 to index
    %c0_509 = arith.constant 0 : index
    %c0_510 = arith.constant 0 : index
    %545 = vector.load %arg3[%c0_508, %544, %c0_509, %c0_510] : memref<1x16x8x128xf32, #tpu.memory_space<vmem>>, vector<1x1x8x128xf32>
    %546 = vector.shape_cast %545 : vector<1x1x8x128xf32> to vector<8x128xf32>
    %c0_511 = arith.constant 0 : index
    %c14_512 = arith.constant 14 : index
    %c2_513 = arith.constant 2 : index
    %c0_514 = arith.constant 0 : index
    %c0_515 = arith.constant 0 : index
    %547 = vector.load %arg4[%c0_511, %c14_512, %c2_513, %c0_514, %c0_515] : memref<1x16x4x8x128xf32, #tpu.memory_space<vmem>>, vector<1x1x1x8x128xf32>
    %548 = vector.shape_cast %547 : vector<1x1x1x8x128xf32> to vector<8x128xf32>
    %549 = vector.shape_cast %546 : vector<8x128xf32> to vector<1x1x1x8x128xf32>
    tpu.vector_store %arg4[%c0_511, %c14_512, %c2_513, %c0_514, %c0_515], %549 {strides = array<i32>} : memref<1x16x4x8x128xf32, #tpu.memory_space<vmem>>, vector<1x1x1x8x128xf32>,
    %c3_i32_516 = arith.constant 3 : i32
    %550 = arith.addi %522, %c3_i32_516 : i32
    %551 = arith.index_cast %550 : i32 to index
    %552 = memref.load %arg2[%551] : memref<256xi32, #tpu.memory_space<smem>>
    %c0_517 = arith.constant 0 : index
    %553 = arith.index_cast %552 : i32 to index
    %c0_518 = arith.constant 0 : index
    %c0_519 = arith.constant 0 : index
    %554 = vector.load %arg3[%c0_517, %553, %c0_518, %c0_519] : memref<1x16x8x128xf32, #tpu.memory_space<vmem>>, vector<1x1x8x128xf32>
    %555 = vector.shape_cast %554 : vector<1x1x8x128xf32> to vector<8x128xf32>
    %c0_520 = arith.constant 0 : index
    %c14_521 = arith.constant 14 : index
    %c3_522 = arith.constant 3 : index
    %c0_523 = arith.constant 0 : index
    %c0_524 = arith.constant 0 : index
    %556 = vector.load %arg4[%c0_520, %c14_521, %c3_522, %c0_523, %c0_524] : memref<1x16x4x8x128xf32, #tpu.memory_space<vmem>>, vector<1x1x1x8x128xf32>
    %557 = vector.shape_cast %556 : vector<1x1x1x8x128xf32> to vector<8x128xf32>
    %558 = vector.shape_cast %555 : vector<8x128xf32> to vector<1x1x1x8x128xf32>
    tpu.vector_store %arg4[%c0_520, %c14_521, %c3_522, %c0_523, %c0_524], %558 {strides = array<i32>} : memref<1x16x4x8x128xf32, #tpu.memory_space<vmem>>, vector<1x1x1x8x128xf32>,
    %c60_i32 = arith.constant 60 : i32
    %559 = arith.addi %3, %c60_i32 : i32
    %c0_i32_525 = arith.constant 0 : i32
    %560 = arith.addi %559, %c0_i32_525 : i32
    %561 = arith.index_cast %560 : i32 to index
    %562 = memref.load %arg2[%561] : memref<256xi32, #tpu.memory_space<smem>>
    %c0_526 = arith.constant 0 : index
    %563 = arith.index_cast %562 : i32 to index
    %c0_527 = arith.constant 0 : index
    %c0_528 = arith.constant 0 : index
    %564 = vector.load %arg3[%c0_526, %563, %c0_527, %c0_528] : memref<1x16x8x128xf32, #tpu.memory_space<vmem>>, vector<1x1x8x128xf32>
    %565 = vector.shape_cast %564 : vector<1x1x8x128xf32> to vector<8x128xf32>
    %c0_529 = arith.constant 0 : index
    %c15 = arith.constant 15 : index
    %c0_530 = arith.constant 0 : index
    %c0_531 = arith.constant 0 : index
    %c0_532 = arith.constant 0 : index
    %566 = vector.load %arg4[%c0_529, %c15, %c0_530, %c0_531, %c0_532] : memref<1x16x4x8x128xf32, #tpu.memory_space<vmem>>, vector<1x1x1x8x128xf32>
    %567 = vector.shape_cast %566 : vector<1x1x1x8x128xf32> to vector<8x128xf32>
    %568 = vector.shape_cast %565 : vector<8x128xf32> to vector<1x1x1x8x128xf32>
    tpu.vector_store %arg4[%c0_529, %c15, %c0_530, %c0_531, %c0_532], %568 {strides = array<i32>} : memref<1x16x4x8x128xf32, #tpu.memory_space<vmem>>, vector<1x1x1x8x128xf32>,
    %c1_i32_533 = arith.constant 1 : i32
    %569 = arith.addi %559, %c1_i32_533 : i32
    %570 = arith.index_cast %569 : i32 to index
    %571 = memref.load %arg2[%570] : memref<256xi32, #tpu.memory_space<smem>>
    %c0_534 = arith.constant 0 : index
    %572 = arith.index_cast %571 : i32 to index
    %c0_535 = arith.constant 0 : index
    %c0_536 = arith.constant 0 : index
    %573 = vector.load %arg3[%c0_534, %572, %c0_535, %c0_536] : memref<1x16x8x128xf32, #tpu.memory_space<vmem>>, vector<1x1x8x128xf32>
    %574 = vector.shape_cast %573 : vector<1x1x8x128xf32> to vector<8x128xf32>
    %c0_537 = arith.constant 0 : index
    %c15_538 = arith.constant 15 : index
    %c1_539 = arith.constant 1 : index
    %c0_540 = arith.constant 0 : index
    %c0_541 = arith.constant 0 : index
    %575 = vector.load %arg4[%c0_537, %c15_538, %c1_539, %c0_540, %c0_541] : memref<1x16x4x8x128xf32, #tpu.memory_space<vmem>>, vector<1x1x1x8x128xf32>
    %576 = vector.shape_cast %575 : vector<1x1x1x8x128xf32> to vector<8x128xf32>
    %577 = vector.shape_cast %574 : vector<8x128xf32> to vector<1x1x1x8x128xf32>
    tpu.vector_store %arg4[%c0_537, %c15_538, %c1_539, %c0_540, %c0_541], %577 {strides = array<i32>} : memref<1x16x4x8x128xf32, #tpu.memory_space<vmem>>, vector<1x1x1x8x128xf32>,
    %c2_i32_542 = arith.constant 2 : i32
    %578 = arith.addi %559, %c2_i32_542 : i32
    %579 = arith.index_cast %578 : i32 to index
    %580 = memref.load %arg2[%579] : memref<256xi32, #tpu.memory_space<smem>>
    %c0_543 = arith.constant 0 : index
    %581 = arith.index_cast %580 : i32 to index
    %c0_544 = arith.constant 0 : index
    %c0_545 = arith.constant 0 : index
    %582 = vector.load %arg3[%c0_543, %581, %c0_544, %c0_545] : memref<1x16x8x128xf32, #tpu.memory_space<vmem>>, vector<1x1x8x128xf32>
    %583 = vector.shape_cast %582 : vector<1x1x8x128xf32> to vector<8x128xf32>
    %c0_546 = arith.constant 0 : index
    %c15_547 = arith.constant 15 : index
    %c2_548 = arith.constant 2 : index
    %c0_549 = arith.constant 0 : index
    %c0_550 = arith.constant 0 : index
    %584 = vector.load %arg4[%c0_546, %c15_547, %c2_548, %c0_549, %c0_550] : memref<1x16x4x8x128xf32, #tpu.memory_space<vmem>>, vector<1x1x1x8x128xf32>
    %585 = vector.shape_cast %584 : vector<1x1x1x8x128xf32> to vector<8x128xf32>
    %586 = vector.shape_cast %583 : vector<8x128xf32> to vector<1x1x1x8x128xf32>
    tpu.vector_store %arg4[%c0_546, %c15_547, %c2_548, %c0_549, %c0_550], %586 {strides = array<i32>} : memref<1x16x4x8x128xf32, #tpu.memory_space<vmem>>, vector<1x1x1x8x128xf32>,
    %c3_i32_551 = arith.constant 3 : i32
    %587 = arith.addi %559, %c3_i32_551 : i32
    %588 = arith.index_cast %587 : i32 to index
    %589 = memref.load %arg2[%588] : memref<256xi32, #tpu.memory_space<smem>>
    %c0_552 = arith.constant 0 : index
    %590 = arith.index_cast %589 : i32 to index
    %c0_553 = arith.constant 0 : index
    %c0_554 = arith.constant 0 : index
    %591 = vector.load %arg3[%c0_552, %590, %c0_553, %c0_554] : memref<1x16x8x128xf32, #tpu.memory_space<vmem>>, vector<1x1x8x128xf32>
    %592 = vector.shape_cast %591 : vector<1x1x8x128xf32> to vector<8x128xf32>
    %c0_555 = arith.constant 0 : index
    %c15_556 = arith.constant 15 : index
    %c3_557 = arith.constant 3 : index
    %c0_558 = arith.constant 0 : index
    %c0_559 = arith.constant 0 : index
    %593 = vector.load %arg4[%c0_555, %c15_556, %c3_557, %c0_558, %c0_559] : memref<1x16x4x8x128xf32, #tpu.memory_space<vmem>>, vector<1x1x1x8x128xf32>
    %594 = vector.shape_cast %593 : vector<1x1x1x8x128xf32> to vector<8x128xf32>
    %595 = vector.shape_cast %592 : vector<8x128xf32> to vector<1x1x1x8x128xf32>
    tpu.vector_store %arg4[%c0_555, %c15_556, %c3_557, %c0_558, %c0_559], %595 {strides = array<i32>} : memref<1x16x4x8x128xf32, #tpu.memory_space<vmem>>, vector<1x1x1x8x128xf32>,
    return
  }
  func.func @transform_0(%arg0: i32, %arg1: i32, %arg2: memref<256xi32, #tpu.memory_space<smem>>) -> (i32, i32, i32, i32) {
    %c0_i32 = arith.constant 0 : i32
    %c0_i32_0 = arith.constant 0 : i32
    %c0_i32_1 = arith.constant 0 : i32
    %c0_i32_2 = arith.constant 0 : i32
    return %arg0, %c0_i32, %c0_i32_0, %c0_i32_1 : i32, i32, i32, i32
  }
  func.func @transform_1(%arg0: i32, %arg1: i32, %arg2: memref<256xi32, #tpu.memory_space<smem>>) -> (i32, i32, i32, i32, i32) {
    %c0_i32 = arith.constant 0 : i32
    %c0_i32_0 = arith.constant 0 : i32
    %c0_i32_1 = arith.constant 0 : i32
    %c0_i32_2 = arith.constant 0 : i32
    return %arg0, %arg1, %c0_i32, %c0_i32_0, %c0_i32_1 : i32, i32, i32, i32, i32
  }
}

</mosaic_0001>

<llo_original>
// kernel: tpu_custom_call.1
$region0: #{tpu_custom_call.1}
  #allocation0 [shape = 'u32[]', space=smem, size = 0x4, offset = 0x4, fixed_abs, tag = 'smem constant byte address 0x4 - core index']
  #allocation1 [shape = 'u32[144,128]{1,0:T(1,128)}', space=vmem, size = 0x12000, scoped, tag = 'internal scratch']
  #allocation2 [shape = 's32[1]{0}', space=sflag, size = 0x4, scoped, tag = 'scoped memory for tpu_custom_call.1']
  #allocation3 [shape = 'u8[1024]{0}', space=smem, size = 0x400, scoped, tag = 'prefetched SMEM operand 0']
  %s0 = inlined_call_operand.hbm [shape: s32[256], index: 0, kind: input, shape index: {}]
  %s1 = inlined_call_operand.hbm [shape: f32[4,16,8,128], index: 1, kind: input, shape index: {}]
  %s2 = inlined_call_operand.hbm [shape: f32[4,16,4,8,128], index: 2, kind: output, shape index: {}]
  %s3 = sld [smem:[#allocation0]]
  $region41: #{tpu_custom_call.1} parent=0
    _
  %s5 = ssub.s32 1, %s3
  %s6 = scalar_select 0, %s5, %s3
  %8 = dma.hbm_to_smem %s0, 32, [#allocation3], [#allocation2]
  %9 = dma.done [#allocation2], 32
  %10 = sfence
  $region1: #{tpu_custom_call.1} parent=0
    #allocation4 [shape = 'u8[131072]{0}', space=vmem, size = 0x20000, scoped, tag = 'input window, operand 1']
    #allocation5 [shape = 's32[2]{0}', space=sflag, size = 0x8, scoped, tag = 'scoped memory for tpu_custom_call.1']
    #allocation6 [shape = 's32[2]{0}', space=sflag, size = 0x8, scoped, tag = 'scoped memory for tpu_custom_call.1']
    #allocation7 [shape = 'u8[524288]{0}', space=vmem, size = 0x80000, scoped, tag = 'output window, operand 0']
    %11 = vsyncpa [#allocation5], 0
    %s12 = scalar_lea.sflag [#allocation5], 1
    %13 = vsyncpa %s12, 0
    %14 = vsyncpa [#allocation6], 0
    %s15 = scalar_lea.sflag [#allocation6], 1
    %16 = vsyncpa %s15, 0
    loop: start=0, step=1, limit=6
    $region2: #{tpu_custom_call.1} parent=1 // loop_pre_header
      _
    $region3: #{tpu_custom_call.1} parent=1 // loop_header
      %s18 = sphi 0, %s22
      %p19 = scmp.ge.s32.totalorder %s18, 6
      %s25 = sphi 0, %s37
      %s26 = sphi 0, %s33
      %s27 = sphi 0, %s25
      %s28 = sphi 0, %s26
      %s29 = sphi 0, %s27
      %s30 = sphi 0, %s28
      %s40 = sphi 0, %s42
      %s43 = sphi 0, %s40
      %s44 = sphi 0, %s43
      %s60 = sphi 0, %s44
      %s68 = sphi 0, %s70
      %s71 = sphi 0, %s68
      %s72 = sphi 0, %s71
      %s88 = sphi 0, %s72
    $region4: #{tpu_custom_call.1} parent=1 // loop_header_branch
      %21 = sbr.rel (%p19) target = $region8
    $region5: #{tpu_custom_call.1} parent=1 // loop_body
      %s23 = ssub.s32 %s18, 1
      %s24 = ssub.s32 %s18, 2
      %s31 = sadd.s32 1, %s26
      %p32 = scmp.ge.s32.totalorder %s31, 1
      %s33 = scalar_select %p32, 0, %s31
      %s34 = sadd.s32 1, %s25
      %s35 = scalar_select %p32, %s34, %s25
      %p36 = scmp.ge.s32.totalorder %s35, 4
      %s37 = scalar_select %p36, 0, %s35
      %s38 = ssub.s32 %s25, %s37
      %p39 = scmp.eq.s32.totalorder %s38, 0
      %s41 = sadd.s32 %s40, 1
      %s42 = scalar_select %p39, %s40, %s41
      %p45 = pneg %p39
      %p46 = scmp.eq.s32.totalorder %s18, 3
      %p47 = por %p45, %p46
      %p48 = scmp.ne.s32.totalorder %s40, %s43
      %p49 = scmp.eq.s32.totalorder %s18, 0
      %p50 = por %p48, %p49
      %p51 = scmp.ne.s32.totalorder %s40, %s43
      %p52 = scmp.eq.s32.totalorder %s23, 3
      %p53 = por %p51, %p52
      %p54 = scmp.ne.s32.totalorder %s43, %s44
      %p55 = scmp.eq.s32.totalorder %s23, 0
      %p56 = por %p54, %p55
      %p57 = scmp.ne.s32.totalorder %s43, %s44
      %p58 = scmp.eq.s32.totalorder %s24, 3
      %p59 = por %p57, %p58
      %p61 = scmp.ne.s32.totalorder %s44, %s60
      %p62 = scmp.eq.s32.totalorder %s24, 0
      %p63 = por %p61, %p62
      %s64 = ssub.s32 %s25, %s37
      %s65 = ssub.s32 %s26, %s33
      %s66 = sor.u32 %s64, %s65
      %p67 = scmp.eq.s32.totalorder %s66, 0
      %s69 = sadd.s32 %s68, 1
      %s70 = scalar_select %p67, %s68, %s69
      %p73 = pneg %p67
      %p74 = scmp.eq.s32.totalorder %s18, 3
      %p75 = por %p73, %p74
      %p76 = scmp.ne.s32.totalorder %s68, %s71
      %p77 = scmp.eq.s32.totalorder %s18, 0
      %p78 = por %p76, %p77
      %p79 = scmp.ne.s32.totalorder %s68, %s71
      %p80 = scmp.eq.s32.totalorder %s23, 3
      %p81 = por %p79, %p80
      %p82 = scmp.ne.s32.totalorder %s71, %s72
      %p83 = scmp.eq.s32.totalorder %s23, 0
      %p84 = por %p82, %p83
      %p85 = scmp.ne.s32.totalorder %s71, %s72
      %p86 = scmp.eq.s32.totalorder %s24, 3
      %p87 = por %p85, %p86
      %p89 = scmp.ne.s32.totalorder %s72, %s88
      %p90 = scmp.eq.s32.totalorder %s24, 0
      %p91 = por %p89, %p90
      %p92 = scmp.le.s32.totalorder 1, %s18
      %p93 = scmp.lt.s32.totalorder %s18, 5
      %p94 = pnand %p92, %p93
      %p95 = pneg %p94
      // Predicated region
      $region9: #{tpu_custom_call.1} parent=5 // pred_check
        _
      $region10: #{tpu_custom_call.1} parent=5 // pred_check_branch
        %97 = sbr.rel (%p94) target = $region12
      $region11: #{tpu_custom_call.1} parent=5 // pred_region
        %s98 = ssub.s32 %s18, 1
      $region12: #{tpu_custom_call.1} parent=5 // pred_fallthru
        _
      %p99 = scmp.lt.s32.totalorder %s18, 4
      // Predicated region
      $region13: #{tpu_custom_call.1} parent=5 // pred_check
        %p100 = pneg %p99
      $region14: #{tpu_custom_call.1} parent=5 // pred_check_branch
        %102 = sbr.rel (%p100) target = $region16
      $region15: #{tpu_custom_call.1} parent=5 // pred_region
        // Predicated region
        $region17: #{tpu_custom_call.1} parent=15 // pred_check
          %p103 = pneg %p50
        $region18: #{tpu_custom_call.1} parent=15 // pred_check_branch
          %105 = sbr.rel (%p103) target = $region20
        $region19: #{tpu_custom_call.1} parent=15 // pred_region
          %s106 = sand.u32 %s40, 1
          %s107 = scalar_lea.sflag [#allocation5], %s106
          %s108 = sand.u32 %s40, 1
          %s109 = smul.addr %s108, 128
          %s110 = scalar_lea.vmem [#allocation4], %s109
          %s112 = ssub.s32 2048, 2048
          %113 = vsyncadd %s107, %s112
          %s114 = smul.addr %s25, 16
          %s115 = smul.addr %s114, 128
          %s116 = scalar_lea.hbm %s1, %s115
          %s117 = sshll.u32 %s110, 4
          %s118 = int_to_ptr.vmem [resolvable:$true] %s117
          %123 = dma.hbm_to_vmem [thread:$0]  %s116, 2048, %s118, %s107, 128, 128, 8
        $region20: #{tpu_custom_call.1} parent=15 // pred_fallthru
          _
      $region16: #{tpu_custom_call.1} parent=5 // pred_fallthru
        _
      %p124 = scmp.le.s32.totalorder 1, %s18
      %p125 = scmp.lt.s32.totalorder %s18, 5
      %p126 = pnand %p124, %p125
      %p127 = pneg %p126
      // Predicated region
      $region21: #{tpu_custom_call.1} parent=5 // pred_check
        _
      $region22: #{tpu_custom_call.1} parent=5 // pred_check_branch
        %129 = sbr.rel (%p126) target = $region24
      $region23: #{tpu_custom_call.1} parent=5 // pred_region
        %s130 = ssub.s32 %s18, 1
        %s131 = sand.u32 %s43, 1
        %s132 = scalar_lea.sflag [#allocation5], %s131
        %s133 = sand.u32 %s43, 1
        %s134 = smul.addr %s133, 128
        %s135 = scalar_lea.vmem [#allocation4], %s134
        // Predicated region
        $region25: #{tpu_custom_call.1} parent=23 // pred_check
          %p136 = pneg %p56
        $region26: #{tpu_custom_call.1} parent=23 // pred_check_branch
          %138 = sbr.rel (%p136) target = $region28
        $region27: #{tpu_custom_call.1} parent=23 // pred_region
          %139 = dma.done %s132, 2048
        $region28: #{tpu_custom_call.1} parent=23 // pred_fallthru
          _
        %s140 = sand.u32 %s43, 1
        %s141 = scalar_lea.sflag [#allocation5], %s140
        %s142 = sand.u32 %s43, 1
        %s143 = smul.addr %s142, 128
        %s144 = scalar_lea.vmem [#allocation4], %s143
        %p145 = pneg %p56
        %p146 = pneg %p53
        %p147 = pneg %p84
        %p148 = pneg %p81
        %s149 = sand.u32 %s71, 1
        %s150 = scalar_lea.sflag [#allocation6], %s149
        %s151 = sand.u32 %s71, 1
        %s152 = smul.addr %s151, 512
        %s153 = scalar_lea.vmem [#allocation7], %s152
        %s154 = smul.u32 16, %s28
        %s155 = smul.u32 %s28, 16
        %s156 = smul.u32 %s27, 16
        %s157 = sadd.s32 %s156, %s155
        %s158 = smul.u32 %s157, 4
        %s159 = sld [smem:[#allocation3 + %s158]]
        %s160 = smul.u32 %s159, 8
        %s161 = scalar_lea.vmem %s135, %s160 [#allocation4]
        %v162 = vld [vmem:[%s161] sm:$0xff]
        %163 = vst [vmem:[%s153] sm:$0xff] %v162
        %s164 = sadd.s32 %s158, 1
        %s165 = sld [smem:[#allocation3 + %s164]]
        %s166 = smul.u32 %s165, 8
        %s167 = scalar_lea.vmem %s135, %s166 [#allocation4]
        %v168 = vld [vmem:[%s167] sm:$0xff]
        %s169 = scalar_lea.vmem %s153, 8 [#allocation7]
        %170 = vst [vmem:[%s169] sm:$0xff] %v168
        %s171 = sadd.s32 %s158, 2
        %s172 = sld [smem:[#allocation3 + %s171]]
        %s173 = smul.u32 %s172, 8
        %s174 = scalar_lea.vmem %s135, %s173 [#allocation4]
        %v175 = vld [vmem:[%s174] sm:$0xff]
        %s176 = scalar_lea.vmem %s153, 16 [#allocation7]
        %177 = vst [vmem:[%s176] sm:$0xff] %v175
        %s178 = sadd.s32 %s158, 3
        %s179 = sld [smem:[#allocation3 + %s178]]
        %s180 = smul.u32 %s179, 8
        %s181 = scalar_lea.vmem %s135, %s180 [#allocation4]
        %v182 = vld [vmem:[%s181] sm:$0xff]
        %s183 = scalar_lea.vmem %s153, 24 [#allocation7]
        %184 = vst [vmem:[%s183] sm:$0xff] %v182
        %s185 = sadd.s32 %s158, 4
        %s186 = sld [smem:[#allocation3 + %s185]]
        %s187 = smul.u32 %s186, 8
        %s188 = scalar_lea.vmem %s135, %s187 [#allocation4]
        %v189 = vld [vmem:[%s188] sm:$0xff]
        %s190 = scalar_lea.vmem %s153, 32 [#allocation7]
        %191 = vst [vmem:[%s190] sm:$0xff] %v189
        %s192 = sadd.s32 %s158, 5
        %s193 = sld [smem:[#allocation3 + %s192]]
        %s194 = smul.u32 %s193, 8
        %s195 = scalar_lea.vmem %s135, %s194 [#allocation4]
        %v196 = vld [vmem:[%s195] sm:$0xff]
        %s197 = scalar_lea.vmem %s153, 40 [#allocation7]
        %198 = vst [vmem:[%s197] sm:$0xff] %v196
        %s199 = sadd.s32 %s158, 6
        %s200 = sld [smem:[#allocation3 + %s199]]
        %s201 = smul.u32 %s200, 8
        %s202 = scalar_lea.vmem %s135, %s201 [#allocation4]
        %v203 = vld [vmem:[%s202] sm:$0xff]
        %s204 = scalar_lea.vmem %s153, 48 [#allocation7]
        %205 = vst [vmem:[%s204] sm:$0xff] %v203
        %s206 = sadd.s32 %s158, 7
        %s207 = sld [smem:[#allocation3 + %s206]]
        %s208 = smul.u32 %s207, 8
        %s209 = scalar_lea.vmem %s135, %s208 [#allocation4]
        %v210 = vld [vmem:[%s209] sm:$0xff]
        %s211 = scalar_lea.vmem %s153, 56 [#allocation7]
        %212 = vst [vmem:[%s211] sm:$0xff] %v210
        %s213 = sadd.s32 %s158, 8
        %s214 = sld [smem:[#allocation3 + %s213]]
        %s215 = smul.u32 %s214, 8
        %s216 = scalar_lea.vmem %s135, %s215 [#allocation4]
        %v217 = vld [vmem:[%s216] sm:$0xff]
        %s218 = scalar_lea.vmem %s153, 64 [#allocation7]
        %219 = vst [vmem:[%s218] sm:$0xff] %v217
        %s220 = sadd.s32 %s158, 9
        %s221 = sld [smem:[#allocation3 + %s220]]
        %s222 = smul.u32 %s221, 8
        %s223 = scalar_lea.vmem %s135, %s222 [#allocation4]
        %v224 = vld [vmem:[%s223] sm:$0xff]
        %s225 = scalar_lea.vmem %s153, 72 [#allocation7]
        %226 = vst [vmem:[%s225] sm:$0xff] %v224
        %s227 = sadd.s32 %s158, 10
        %s228 = sld [smem:[#allocation3 + %s227]]
        %s229 = smul.u32 %s228, 8
        %s230 = scalar_lea.vmem %s135, %s229 [#allocation4]
        %v231 = vld [vmem:[%s230] sm:$0xff]
        %s232 = scalar_lea.vmem %s153, 80 [#allocation7]
        %233 = vst [vmem:[%s232] sm:$0xff] %v231
        %s234 = sadd.s32 %s158, 11
        %s235 = sld [smem:[#allocation3 + %s234]]
        %s236 = smul.u32 %s235, 8
        %s237 = scalar_lea.vmem %s135, %s236 [#allocation4]
        %v238 = vld [vmem:[%s237] sm:$0xff]
        %s239 = scalar_lea.vmem %s153, 88 [#allocation7]
        %240 = vst [vmem:[%s239] sm:$0xff] %v238
        %s241 = sadd.s32 %s158, 12
        %s242 = sld [smem:[#allocation3 + %s241]]
        %s243 = smul.u32 %s242, 8
        %s244 = scalar_lea.vmem %s135, %s243 [#allocation4]
        %v245 = vld [vmem:[%s244] sm:$0xff]
        %s246 = scalar_lea.vmem %s153, 96 [#allocation7]
        %247 = vst [vmem:[%s246] sm:$0xff] %v245
        %s248 = sadd.s32 %s158, 13
        %s249 = sld [smem:[#allocation3 + %s248]]
        %s250 = smul.u32 %s249, 8
        %s251 = scalar_lea.vmem %s135, %s250 [#allocation4]
        %v252 = vld [vmem:[%s251] sm:$0xff]
        %s253 = scalar_lea.vmem %s153, 104 [#allocation7]
        %254 = vst [vmem:[%s253] sm:$0xff] %v252
        %s255 = sadd.s32 %s158, 14
        %s256 = sld [smem:[#allocation3 + %s255]]
        %s257 = smul.u32 %s256, 8
        %s258 = scalar_lea.vmem %s135, %s257 [#allocation4]
        %v259 = vld [vmem:[%s258] sm:$0xff]
        %s260 = scalar_lea.vmem %s153, 112 [#allocation7]
        %261 = vst [vmem:[%s260] sm:$0xff] %v259
        %s262 = sadd.s32 %s158, 15
        %s263 = sld [smem:[#allocation3 + %s262]]
        %s264 = smul.u32 %s263, 8
        %s265 = scalar_lea.vmem %s135, %s264 [#allocation4]
        %v266 = vld [vmem:[%s265] sm:$0xff]
        %s267 = scalar_lea.vmem %s153, 120 [#allocation7]
        %268 = vst [vmem:[%s267] sm:$0xff] %v266
        %s269 = sadd.s32 %s158, 16
        %s270 = sld [smem:[#allocation3 + %s269]]
        %s271 = smul.u32 %s270, 8
        %s272 = scalar_lea.vmem %s135, %s271 [#allocation4]
        %v273 = vld [vmem:[%s272] sm:$0xff]
        %s274 = scalar_lea.vmem %s153, 128 [#allocation7]
        %275 = vst [vmem:[%s274] sm:$0xff] %v273
        %s276 = sadd.s32 %s158, 17
        %s277 = sld [smem:[#allocation3 + %s276]]
        %s278 = smul.u32 %s277, 8
        %s279 = scalar_lea.vmem %s135, %s278 [#allocation4]
        %v280 = vld [vmem:[%s279] sm:$0xff]
        %s281 = scalar_lea.vmem %s153, 136 [#allocation7]
        %282 = vst [vmem:[%s281] sm:$0xff] %v280
        %s283 = sadd.s32 %s158, 18
        %s284 = sld [smem:[#allocation3 + %s283]]
        %s285 = smul.u32 %s284, 8
        %s286 = scalar_lea.vmem %s135, %s285 [#allocation4]
        %v287 = vld [vmem:[%s286] sm:$0xff]
        %s288 = scalar_lea.vmem %s153, 144 [#allocation7]
        %289 = vst [vmem:[%s288] sm:$0xff] %v287
        %s290 = sadd.s32 %s158, 19
        %s291 = sld [smem:[#allocation3 + %s290]]
        %s292 = smul.u32 %s291, 8
        %s293 = scalar_lea.vmem %s135, %s292 [#allocation4]
        %v294 = vld [vmem:[%s293] sm:$0xff]
        %s295 = scalar_lea.vmem %s153, 152 [#allocation7]
        %296 = vst [vmem:[%s295] sm:$0xff] %v294
        %s297 = sadd.s32 %s158, 20
        %s298 = sld [smem:[#allocation3 + %s297]]
        %s299 = smul.u32 %s298, 8
        %s300 = scalar_lea.vmem %s135, %s299 [#allocation4]
        %v301 = vld [vmem:[%s300] sm:$0xff]
        %s302 = scalar_lea.vmem %s153, 160 [#allocation7]
        %303 = vst [vmem:[%s302] sm:$0xff] %v301
        %s304 = sadd.s32 %s158, 21
        %s305 = sld [smem:[#allocation3 + %s304]]
        %s306 = smul.u32 %s305, 8
        %s307 = scalar_lea.vmem %s135, %s306 [#allocation4]
        %v308 = vld [vmem:[%s307] sm:$0xff]
        %s309 = scalar_lea.vmem %s153, 168 [#allocation7]
        %310 = vst [vmem:[%s309] sm:$0xff] %v308
        %s311 = sadd.s32 %s158, 22
        %s312 = sld [smem:[#allocation3 + %s311]]
        %s313 = smul.u32 %s312, 8
        %s314 = scalar_lea.vmem %s135, %s313 [#allocation4]
        %v315 = vld [vmem:[%s314] sm:$0xff]
        %s316 = scalar_lea.vmem %s153, 176 [#allocation7]
        %317 = vst [vmem:[%s316] sm:$0xff] %v315
        %s318 = sadd.s32 %s158, 23
        %s319 = sld [smem:[#allocation3 + %s318]]
        %s320 = smul.u32 %s319, 8
        %s321 = scalar_lea.vmem %s135, %s320 [#allocation4]
        %v322 = vld [vmem:[%s321] sm:$0xff]
        %s323 = scalar_lea.vmem %s153, 184 [#allocation7]
        %324 = vst [vmem:[%s323] sm:$0xff] %v322
        %s325 = sadd.s32 %s158, 24
        %s326 = sld [smem:[#allocation3 + %s325]]
        %s327 = smul.u32 %s326, 8
        %s328 = scalar_lea.vmem %s135, %s327 [#allocation4]
        %v329 = vld [vmem:[%s328] sm:$0xff]
        %s330 = scalar_lea.vmem %s153, 192 [#allocation7]
        %331 = vst [vmem:[%s330] sm:$0xff] %v329
        %s332 = sadd.s32 %s158, 25
        %s333 = sld [smem:[#allocation3 + %s332]]
        %s334 = smul.u32 %s333, 8
        %s335 = scalar_lea.vmem %s135, %s334 [#allocation4]
        %v336 = vld [vmem:[%s335] sm:$0xff]
        %s337 = scalar_lea.vmem %s153, 200 [#allocation7]
        %338 = vst [vmem:[%s337] sm:$0xff] %v336
        %s339 = sadd.s32 %s158, 26
        %s340 = sld [smem:[#allocation3 + %s339]]
        %s341 = smul.u32 %s340, 8
        %s342 = scalar_lea.vmem %s135, %s341 [#allocation4]
        %v343 = vld [vmem:[%s342] sm:$0xff]
        %s344 = scalar_lea.vmem %s153, 208 [#allocation7]
        %345 = vst [vmem:[%s344] sm:$0xff] %v343
        %s346 = sadd.s32 %s158, 27
        %s347 = sld [smem:[#allocation3 + %s346]]
        %s348 = smul.u32 %s347, 8
        %s349 = scalar_lea.vmem %s135, %s348 [#allocation4]
        %v350 = vld [vmem:[%s349] sm:$0xff]
        %s351 = scalar_lea.vmem %s153, 216 [#allocation7]
        %352 = vst [vmem:[%s351] sm:$0xff] %v350
        %s353 = sadd.s32 %s158, 28
        %s354 = sld [smem:[#allocation3 + %s353]]
        %s355 = smul.u32 %s354, 8
        %s356 = scalar_lea.vmem %s135, %s355 [#allocation4]
        %v357 = vld [vmem:[%s356] sm:$0xff]
        %s358 = scalar_lea.vmem %s153, 224 [#allocation7]
        %359 = vst [vmem:[%s358] sm:$0xff] %v357
        %s360 = sadd.s32 %s158, 29
        %s361 = sld [smem:[#allocation3 + %s360]]
        %s362 = smul.u32 %s361, 8
        %s363 = scalar_lea.vmem %s135, %s362 [#allocation4]
        %v364 = vld [vmem:[%s363] sm:$0xff]
        %s365 = scalar_lea.vmem %s153, 232 [#allocation7]
        %366 = vst [vmem:[%s365] sm:$0xff] %v364
        %s367 = sadd.s32 %s158, 30
        %s368 = sld [smem:[#allocation3 + %s367]]
        %s369 = smul.u32 %s368, 8
        %s370 = scalar_lea.vmem %s135, %s369 [#allocation4]
        %v371 = vld [vmem:[%s370] sm:$0xff]
        %s372 = scalar_lea.vmem %s153, 240 [#allocation7]
        %373 = vst [vmem:[%s372] sm:$0xff] %v371
        %s374 = sadd.s32 %s158, 31
        %s375 = sld [smem:[#allocation3 + %s374]]
        %s376 = smul.u32 %s375, 8
        %s377 = scalar_lea.vmem %s135, %s376 [#allocation4]
        %v378 = vld [vmem:[%s377] sm:$0xff]
        %s379 = scalar_lea.vmem %s153, 248 [#allocation7]
        %380 = vst [vmem:[%s379] sm:$0xff] %v378
        %s381 = sadd.s32 %s158, 32
        %s382 = sld [smem:[#allocation3 + %s381]]
        %s383 = smul.u32 %s382, 8
        %s384 = scalar_lea.vmem %s135, %s383 [#allocation4]
        %v385 = vld [vmem:[%s384] sm:$0xff]
        %s386 = scalar_lea.vmem %s153, 256 [#allocation7]
        %387 = vst [vmem:[%s386] sm:$0xff] %v385
        %s388 = sadd.s32 %s158, 33
        %s389 = sld [smem:[#allocation3 + %s388]]
        %s390 = smul.u32 %s389, 8
        %s391 = scalar_lea.vmem %s135, %s390 [#allocation4]
        %v392 = vld [vmem:[%s391] sm:$0xff]
        %s393 = scalar_lea.vmem %s153, 264 [#allocation7]
        %394 = vst [vmem:[%s393] sm:$0xff] %v392
        %s395 = sadd.s32 %s158, 34
        %s396 = sld [smem:[#allocation3 + %s395]]
        %s397 = smul.u32 %s396, 8
        %s398 = scalar_lea.vmem %s135, %s397 [#allocation4]
        %v399 = vld [vmem:[%s398] sm:$0xff]
        %s400 = scalar_lea.vmem %s153, 272 [#allocation7]
        %401 = vst [vmem:[%s400] sm:$0xff] %v399
        %s402 = sadd.s32 %s158, 35
        %s403 = sld [smem:[#allocation3 + %s402]]
        %s404 = smul.u32 %s403, 8
        %s405 = scalar_lea.vmem %s135, %s404 [#allocation4]
        %v406 = vld [vmem:[%s405] sm:$0xff]
        %s407 = scalar_lea.vmem %s153, 280 [#allocation7]
        %408 = vst [vmem:[%s407] sm:$0xff] %v406
        %s409 = sadd.s32 %s158, 36
        %s410 = sld [smem:[#allocation3 + %s409]]
        %s411 = smul.u32 %s410, 8
        %s412 = scalar_lea.vmem %s135, %s411 [#allocation4]
        %v413 = vld [vmem:[%s412] sm:$0xff]
        %s414 = scalar_lea.vmem %s153, 288 [#allocation7]
        %415 = vst [vmem:[%s414] sm:$0xff] %v413
        %s416 = sadd.s32 %s158, 37
        %s417 = sld [smem:[#allocation3 + %s416]]
        %s418 = smul.u32 %s417, 8
        %s419 = scalar_lea.vmem %s135, %s418 [#allocation4]
        %v420 = vld [vmem:[%s419] sm:$0xff]
        %s421 = scalar_lea.vmem %s153, 296 [#allocation7]
        %422 = vst [vmem:[%s421] sm:$0xff] %v420
        %s423 = sadd.s32 %s158, 38
        %s424 = sld [smem:[#allocation3 + %s423]]
        %s425 = smul.u32 %s424, 8
        %s426 = scalar_lea.vmem %s135, %s425 [#allocation4]
        %v427 = vld [vmem:[%s426] sm:$0xff]
        %s428 = scalar_lea.vmem %s153, 304 [#allocation7]
        %429 = vst [vmem:[%s428] sm:$0xff] %v427
        %s430 = sadd.s32 %s158, 39
        %s431 = sld [smem:[#allocation3 + %s430]]
        %s432 = smul.u32 %s431, 8
        %s433 = scalar_lea.vmem %s135, %s432 [#allocation4]
        %v434 = vld [vmem:[%s433] sm:$0xff]
        %s435 = scalar_lea.vmem %s153, 312 [#allocation7]
        %436 = vst [vmem:[%s435] sm:$0xff] %v434
        %s437 = sadd.s32 %s158, 40
        %s438 = sld [smem:[#allocation3 + %s437]]
        %s439 = smul.u32 %s438, 8
        %s440 = scalar_lea.vmem %s135, %s439 [#allocation4]
        %v441 = vld [vmem:[%s440] sm:$0xff]
        %s442 = scalar_lea.vmem %s153, 320 [#allocation7]
        %443 = vst [vmem:[%s442] sm:$0xff] %v441
        %s444 = sadd.s32 %s158, 41
        %s445 = sld [smem:[#allocation3 + %s444]]
        %s446 = smul.u32 %s445, 8
        %s447 = scalar_lea.vmem %s135, %s446 [#allocation4]
        %v448 = vld [vmem:[%s447] sm:$0xff]
        %s449 = scalar_lea.vmem %s153, 328 [#allocation7]
        %450 = vst [vmem:[%s449] sm:$0xff] %v448
        %s451 = sadd.s32 %s158, 42
        %s452 = sld [smem:[#allocation3 + %s451]]
        %s453 = smul.u32 %s452, 8
        %s454 = scalar_lea.vmem %s135, %s453 [#allocation4]
        %v455 = vld [vmem:[%s454] sm:$0xff]
        %s456 = scalar_lea.vmem %s153, 336 [#allocation7]
        %457 = vst [vmem:[%s456] sm:$0xff] %v455
        %s458 = sadd.s32 %s158, 43
        %s459 = sld [smem:[#allocation3 + %s458]]
        %s460 = smul.u32 %s459, 8
        %s461 = scalar_lea.vmem %s135, %s460 [#allocation4]
        %v462 = vld [vmem:[%s461] sm:$0xff]
        %s463 = scalar_lea.vmem %s153, 344 [#allocation7]
        %464 = vst [vmem:[%s463] sm:$0xff] %v462
        %s465 = sadd.s32 %s158, 44
        %s466 = sld [smem:[#allocation3 + %s465]]
        %s467 = smul.u32 %s466, 8
        %s468 = scalar_lea.vmem %s135, %s467 [#allocation4]
        %v469 = vld [vmem:[%s468] sm:$0xff]
        %s470 = scalar_lea.vmem %s153, 352 [#allocation7]
        %471 = vst [vmem:[%s470] sm:$0xff] %v469
        %s472 = sadd.s32 %s158, 45
        %s473 = sld [smem:[#allocation3 + %s472]]
        %s474 = smul.u32 %s473, 8
        %s475 = scalar_lea.vmem %s135, %s474 [#allocation4]
        %v476 = vld [vmem:[%s475] sm:$0xff]
        %s477 = scalar_lea.vmem %s153, 360 [#allocation7]
        %478 = vst [vmem:[%s477] sm:$0xff] %v476
        %s479 = sadd.s32 %s158, 46
        %s480 = sld [smem:[#allocation3 + %s479]]
        %s481 = smul.u32 %s480, 8
        %s482 = scalar_lea.vmem %s135, %s481 [#allocation4]
        %v483 = vld [vmem:[%s482] sm:$0xff]
        %s484 = scalar_lea.vmem %s153, 368 [#allocation7]
        %485 = vst [vmem:[%s484] sm:$0xff] %v483
        %s486 = sadd.s32 %s158, 47
        %s487 = sld [smem:[#allocation3 + %s486]]
        %s488 = smul.u32 %s487, 8
        %s489 = scalar_lea.vmem %s135, %s488 [#allocation4]
        %v490 = vld [vmem:[%s489] sm:$0xff]
        %s491 = scalar_lea.vmem %s153, 376 [#allocation7]
        %492 = vst [vmem:[%s491] sm:$0xff] %v490
        %s493 = sadd.s32 %s158, 48
        %s494 = sld [smem:[#allocation3 + %s493]]
        %s495 = smul.u32 %s494, 8
        %s496 = scalar_lea.vmem %s135, %s495 [#allocation4]
        %v497 = vld [vmem:[%s496] sm:$0xff]
        %s498 = scalar_lea.vmem %s153, 384 [#allocation7]
        %499 = vst [vmem:[%s498] sm:$0xff] %v497
        %s500 = sadd.s32 %s158, 49
        %s501 = sld [smem:[#allocation3 + %s500]]
        %s502 = smul.u32 %s501, 8
        %s503 = scalar_lea.vmem %s135, %s502 [#allocation4]
        %v504 = vld [vmem:[%s503] sm:$0xff]
        %s505 = scalar_lea.vmem %s153, 392 [#allocation7]
        %506 = vst [vmem:[%s505] sm:$0xff] %v504
        %s507 = sadd.s32 %s158, 50
        %s508 = sld [smem:[#allocation3 + %s507]]
        %s509 = smul.u32 %s508, 8
        %s510 = scalar_lea.vmem %s135, %s509 [#allocation4]
        %v511 = vld [vmem:[%s510] sm:$0xff]
        %s512 = scalar_lea.vmem %s153, 400 [#allocation7]
        %513 = vst [vmem:[%s512] sm:$0xff] %v511
        %s514 = sadd.s32 %s158, 51
        %s515 = sld [smem:[#allocation3 + %s514]]
        %s516 = smul.u32 %s515, 8
        %s517 = scalar_lea.vmem %s135, %s516 [#allocation4]
        %v518 = vld [vmem:[%s517] sm:$0xff]
        %s519 = scalar_lea.vmem %s153, 408 [#allocation7]
        %520 = vst [vmem:[%s519] sm:$0xff] %v518
        %s521 = sadd.s32 %s158, 52
        %s522 = sld [smem:[#allocation3 + %s521]]
        %s523 = smul.u32 %s522, 8
        %s524 = scalar_lea.vmem %s135, %s523 [#allocation4]
        %v525 = vld [vmem:[%s524] sm:$0xff]
        %s526 = scalar_lea.vmem %s153, 416 [#allocation7]
        %527 = vst [vmem:[%s526] sm:$0xff] %v525
        %s528 = sadd.s32 %s158, 53
        %s529 = sld [smem:[#allocation3 + %s528]]
        %s530 = smul.u32 %s529, 8
        %s531 = scalar_lea.vmem %s135, %s530 [#allocation4]
        %v532 = vld [vmem:[%s531] sm:$0xff]
        %s533 = scalar_lea.vmem %s153, 424 [#allocation7]
        %534 = vst [vmem:[%s533] sm:$0xff] %v532
        %s535 = sadd.s32 %s158, 54
        %s536 = sld [smem:[#allocation3 + %s535]]
        %s537 = smul.u32 %s536, 8
        %s538 = scalar_lea.vmem %s135, %s537 [#allocation4]
        %v539 = vld [vmem:[%s538] sm:$0xff]
        %s540 = scalar_lea.vmem %s153, 432 [#allocation7]
        %541 = vst [vmem:[%s540] sm:$0xff] %v539
        %s542 = sadd.s32 %s158, 55
        %s543 = sld [smem:[#allocation3 + %s542]]
        %s544 = smul.u32 %s543, 8
        %s545 = scalar_lea.vmem %s135, %s544 [#allocation4]
        %v546 = vld [vmem:[%s545] sm:$0xff]
        %s547 = scalar_lea.vmem %s153, 440 [#allocation7]
        %548 = vst [vmem:[%s547] sm:$0xff] %v546
        %s549 = sadd.s32 %s158, 56
        %s550 = sld [smem:[#allocation3 + %s549]]
        %s551 = smul.u32 %s550, 8
        %s552 = scalar_lea.vmem %s135, %s551 [#allocation4]
        %v553 = vld [vmem:[%s552] sm:$0xff]
        %s554 = scalar_lea.vmem %s153, 448 [#allocation7]
        %555 = vst [vmem:[%s554] sm:$0xff] %v553
        %s556 = sadd.s32 %s158, 57
        %s557 = sld [smem:[#allocation3 + %s556]]
        %s558 = smul.u32 %s557, 8
        %s559 = scalar_lea.vmem %s135, %s558 [#allocation4]
        %v560 = vld [vmem:[%s559] sm:$0xff]
        %s561 = scalar_lea.vmem %s153, 456 [#allocation7]
        %562 = vst [vmem:[%s561] sm:$0xff] %v560
        %s563 = sadd.s32 %s158, 58
        %s564 = sld [smem:[#allocation3 + %s563]]
        %s565 = smul.u32 %s564, 8
        %s566 = scalar_lea.vmem %s135, %s565 [#allocation4]
        %v567 = vld [vmem:[%s566] sm:$0xff]
        %s568 = scalar_lea.vmem %s153, 464 [#allocation7]
        %569 = vst [vmem:[%s568] sm:$0xff] %v567
        %s570 = sadd.s32 %s158, 59
        %s571 = sld [smem:[#allocation3 + %s570]]
        %s572 = smul.u32 %s571, 8
        %s573 = scalar_lea.vmem %s135, %s572 [#allocation4]
        %v574 = vld [vmem:[%s573] sm:$0xff]
        %s575 = scalar_lea.vmem %s153, 472 [#allocation7]
        %576 = vst [vmem:[%s575] sm:$0xff] %v574
        %s577 = sadd.s32 %s158, 60
        %s578 = sld [smem:[#allocation3 + %s577]]
        %s579 = smul.u32 %s578, 8
        %s580 = scalar_lea.vmem %s135, %s579 [#allocation4]
        %v581 = vld [vmem:[%s580] sm:$0xff]
        %s582 = scalar_lea.vmem %s153, 480 [#allocation7]
        %583 = vst [vmem:[%s582] sm:$0xff] %v581
        %s584 = sadd.s32 %s158, 61
        %s585 = sld [smem:[#allocation3 + %s584]]
        %s586 = smul.u32 %s585, 8
        %s587 = scalar_lea.vmem %s135, %s586 [#allocation4]
        %v588 = vld [vmem:[%s587] sm:$0xff]
        %s589 = scalar_lea.vmem %s153, 488 [#allocation7]
        %590 = vst [vmem:[%s589] sm:$0xff] %v588
        %s591 = sadd.s32 %s158, 62
        %s592 = sld [smem:[#allocation3 + %s591]]
        %s593 = smul.u32 %s592, 8
        %s594 = scalar_lea.vmem %s135, %s593 [#allocation4]
        %v595 = vld [vmem:[%s594] sm:$0xff]
        %s596 = scalar_lea.vmem %s153, 496 [#allocation7]
        %597 = vst [vmem:[%s596] sm:$0xff] %v595
        %s598 = sadd.s32 %s158, 63
        %s599 = sld [smem:[#allocation3 + %s598]]
        %s600 = smul.u32 %s599, 8
        %s601 = scalar_lea.vmem %s135, %s600 [#allocation4]
        %v602 = vld [vmem:[%s601] sm:$0xff]
        %s603 = scalar_lea.vmem %s153, 504 [#allocation7]
        %604 = vst [vmem:[%s603] sm:$0xff] %v602
        %s605 = sand.u32 %s71, 1
        %s606 = scalar_lea.sflag [#allocation6], %s605
        %s607 = sand.u32 %s71, 1
        %s608 = smul.addr %s607, 512
        %s609 = scalar_lea.vmem [#allocation7], %s608
        // Predicated region
        $region29: #{tpu_custom_call.1} parent=23 // pred_check
          %p610 = pneg %p81
        $region30: #{tpu_custom_call.1} parent=23 // pred_check_branch
          %612 = sbr.rel (%p610) target = $region32
        $region31: #{tpu_custom_call.1} parent=23 // pred_region
          %s613 = smul.u32 16, %s28
          %s615 = ssub.s32 8192, 8192
          %616 = vsyncadd %s606, %s615
          %s617 = smul.addr %s613, 4
          %s618 = smul.addr %s27, 64
          %s619 = sadd.s32 %s617, %s618
          %s620 = smul.addr %s619, 128
          %s621 = scalar_lea.hbm %s2, %s620
          %s622 = sshll.u32 %s609, 4
          %s623 = int_to_ptr.vmem [resolvable:$true] %s622
          %628 = dma.vmem_to_hbm [thread:$0]  %s623, 8192, %s621, %s606, 128, 128, 8
        $region32: #{tpu_custom_call.1} parent=23 // pred_fallthru
          _
      $region24: #{tpu_custom_call.1} parent=5 // pred_fallthru
        _
      %p629 = scmp.le.s32.totalorder 2, %s18
      // Predicated region
      $region33: #{tpu_custom_call.1} parent=5 // pred_check
        %p630 = pneg %p629
      $region34: #{tpu_custom_call.1} parent=5 // pred_check_branch
        %632 = sbr.rel (%p630) target = $region36
      $region35: #{tpu_custom_call.1} parent=5 // pred_region
        %s633 = ssub.s32 %s18, 2
        // Predicated region
        $region37: #{tpu_custom_call.1} parent=35 // pred_check
          %p634 = pneg %p87
        $region38: #{tpu_custom_call.1} parent=35 // pred_check_branch
          %636 = sbr.rel (%p634) target = $region40
        $region39: #{tpu_custom_call.1} parent=35 // pred_region
          %s637 = sand.u32 %s72, 1
          %s638 = scalar_lea.sflag [#allocation6], %s637
          %s639 = sand.u32 %s72, 1
          %s640 = smul.addr %s639, 512
          %s641 = scalar_lea.vmem [#allocation7], %s640
          %642 = dma.done %s638, 8192
        $region40: #{tpu_custom_call.1} parent=35 // pred_fallthru
          _
      $region36: #{tpu_custom_call.1} parent=5 // pred_fallthru
        _
    $region6: #{tpu_custom_call.1} parent=1 // loop_footer
      %s22 = sadd.s32 1, %s18
    $region7: #{tpu_custom_call.1} parent=1 // loop_footer_branch
      %17 = sbr.rel target = $region3
    $region8: #{tpu_custom_call.1} parent=1 // loop_exit
      _
    %643 = vsyncpa [#allocation5], 1
    %s644 = scalar_lea.sflag [#allocation5], 1
    %645 = vsyncpa %s644, 1
    %646 = vsyncpa [#allocation6], 1
    %s647 = scalar_lea.sflag [#allocation6], 1
    %648 = vsyncpa %s647, 1

</llo_original>
